<compile_context>
chip_gen: v6e
topology: v6e:2x2x1
jax: 0.10.0
libtpu: 0.0.40
codegen_flags: <defaults>
</compile_context>

<pallas_src>
import functools

import jax
import jax.numpy as jnp
import numpy as np
from jax.experimental import pallas as pl
from jax.experimental.pallas import tpu as pltpu


def _round_up(a, b):
    return (a + b - 1) // b * b


def _quad_kernel(x_ref, lut_ref, out_ref, *, dim, binsize, k_chunk):
    """x_ref: (4, TN) rows=[context,r,g,b]; lut_ref: (144, L_pad) bf16 corner-packed
    hi/mid/lo LUT; out_ref: (3, TN). Pixels live on the 128-lane axis."""
    x = x_ref[...].astype(jnp.float32)
    ctx = x[0:1, :]                            # context weight in [0, 1], (1, TN)

    inv_bin = jnp.float32(1.0 / binsize)
    rq = x[1:2, :] * inv_bin
    gq = x[2:3, :] * inv_bin
    bq = x[3:4, :] * inv_bin
    r_f = jnp.floor(rq)
    g_f = jnp.floor(gq)
    b_f = jnp.floor(bq)
    r_d = rq - r_f                             # fractional weights, (1, TN)
    g_d = gq - g_f
    b_d = bq - b_f
    base = (r_f + g_f * dim + b_f * (dim * dim)).astype(jnp.int32)   # (1, TN)

    n_rows = lut_ref.shape[0]                  # 144 = 3 bf16 terms x 48 rows
    l_pad = lut_ref.shape[1]
    tn = x_ref.shape[1]

    # Hoisted, loop-invariant chunk iota (JAX does not CSE broadcast_in_dim).
    row_iota = jax.lax.broadcasted_iota(jnp.int32, (k_chunk, tn), 0)

    # K-chunked one-hot gather: never materialize the full (L_pad, TN) one-hot.
    # Each chunk's one-hot build (VPU compare/convert) overlaps the previous
    # chunk's MXU matmul (separate VLIW slots).
    acc = None
    for start in range(0, l_pad, k_chunk):
        # bool -> f32 -> bf16: the f32 hop keeps the convert on a path that is
        # supported on every TPU generation; the extra VPU convert is hidden
        # under the MXU work.
        onehot = ((row_iota == (base - start))
                  .astype(jnp.float32).astype(jnp.bfloat16))          # (KC, TN)
        part = jnp.dot(lut_ref[:, start:start + k_chunk], onehot,
                       preferred_element_type=jnp.float32)            # (144, TN)
        acc = part if acc is None else acc + part

    # Recombine hi/mid/lo bf16 terms -> f32-fidelity LUT corner values (48, TN),
    # rows = corner*6 + context*3 + channel, corner = db*4 + dg*2 + dr.
    vals = acc[0:48, :] + acc[48:96, :] + acc[96:144, :]

    one = jnp.float32(1.0)
    wr0, wr1 = one - r_d, r_d
    wg0, wg1 = one - g_d, g_d
    wb0, wb1 = one - b_d, b_d

    # Tree reduction over the trilinear corners (dr -> dg -> db), then the
    # context blend.  Each (6, TN) slab carries [ctx0 rgb, ctx1 rgb].
    t = []
    for p in range(4):                          # p = db*2 + dg ; dr is the inner pair
        v0 = vals[12 * p:12 * p + 6, :]         # dr = 0
        v1 = vals[12 * p + 6:12 * p + 12, :]    # dr = 1
        t.append(wr0 * v0 + wr1 * v1)
    u0 = wg0 * t[0] + wg1 * t[1]                # db = 0
    u1 = wg0 * t[2] + wg1 * t[3]                # db = 1
    v = wb0 * u0 + wb1 * u1                     # (6, TN)
    out = (one - ctx) * v[0:3, :] + ctx * v[3:6, :]
    out_ref[...] = out.astype(out_ref.dtype)


def quadrilinear_interpolation_4d(lut, x, *, tile_n=2048, k_chunk=256):
    """Forward of QuadrilinearInterpolation_4D. Returns (lut, output)."""
    B, C, W, H = x.shape
    assert C == 4, "x must have 4 channels: [context, r, g, b]"
    dim = lut.shape[-1]
    binsize = 1.000001 / (dim - 1)
    N = B * W * H
    L = dim ** 3

    # k_chunk = 256 by default (128 is marginally better on v5e's 128-deep MXU).
    k_chunk = max(128, (int(k_chunk) // 128) * 128)
    l_pad = _round_up(L, k_chunk)

    # ---- tile sizing -------------------------------------------------------
    tile_n = max(128, (int(tile_n) // 128) * 128)
    # Small problems: make sure the ("parallel",) grid axis has >= 2 steps so
    # both v7x TensorCores get work and the input/output pipeline can overlap.
    if _round_up(N, 128) < 2 * tile_n:
        tile_n = max(128, _round_up((N + 1) // 2, 128))
    # VMEM-aware cap.  With the K-chunked one-hot a 128-wide tile always fits,
    # so flooring at 128 is genuinely safe (fixes the old broken max_tile cap).
    lut_rows = 3 * 48                                   # hi/mid/lo x (corner,ctx,ch)
    lut_bytes = lut_rows * l_pad * 2                    # bf16
    per_px_bytes = 8 * k_chunk + 4 * lut_rows + 512     # iota + one-hots + f32 acc + temps
    vmem_budget = 24 * 1024 * 1024                      # headroom under the 32 MiB limit
    cap = max(128, ((max(vmem_budget - 2 * lut_bytes, 0) // per_px_bytes) // 128) * 128)
    tile_n = min(tile_n, cap)
    n_pad = _round_up(N, tile_n)

    # ---- input layout ------------------------------------------------------
    # Channel-major flat view. This plain reshape reproduces the CUDA flat-index
    # semantics (channel stride = B*W*H over the raw NCHW buffer) with no transpose.
    x_cm = x.reshape(4, N)
    if n_pad != N:
        x_cm = jnp.pad(x_cm, ((0, 0), (0, n_pad - N)))

    # ---- corner-packed, hi/mid/lo bf16-split LUT ----------------------------
    # lut48[row, base] with row = corner*6 + context*3 + channel,
    # base = b*dim^2 + g*dim + r, corner = db*4 + dg*2 + dr.  Edge-pad the
    # spatial axes so the +1 corner of boundary cells is well defined (those
    # cells are never selected by in-range inputs).
    lut_f32 = lut.astype(jnp.float32)
    lut_p = jnp.pad(lut_f32, ((0, 0), (0, 0), (0, 1), (0, 1), (0, 1)), mode="edge")
    corners = []
    for db in (0, 1):
        for dg in (0, 1):
            for dr in (0, 1):
                corners.append(
                    lut_p[:, :, db:db + dim, dg:dg + dim, dr:dr + dim]
                    .reshape(3, 2, L))
    lut48 = jnp.stack(corners, axis=0)                  # (corner, ch, ctx, base)
    lut48 = jnp.transpose(lut48, (0, 2, 1, 3))          # (corner, ctx, ch, base)
    lut48 = lut48.reshape(48, L)
    lut48 = jnp.pad(lut48, ((0, 0), (0, l_pad - L)))    # (48, L_pad) f32, lane-dense

    # 3-term bf16 split: hi + mid + lo reproduces the f32 LUT to ~2^-24 relative,
    # so the bf16 MXU path keeps full f32 fidelity (one-hot entries are exact).
    lut_hi = lut48.astype(jnp.bfloat16)
    res1 = lut48 - lut_hi.astype(jnp.float32)
    lut_mid = res1.astype(jnp.bfloat16)
    res2 = res1 - lut_mid.astype(jnp.float32)
    lut_lo = res2.astype(jnp.bfloat16)
    lut_pk = jnp.concatenate([lut_hi, lut_mid, lut_lo], axis=0)   # (144, L_pad) bf16

    out = pl.pallas_call(
        functools.partial(_quad_kernel, dim=dim, binsize=binsize, k_chunk=k_chunk),
        out_shape=jax.ShapeDtypeStruct((3, n_pad), x.dtype),
        grid_spec=pltpu.PrefetchScalarGridSpec(
            num_scalar_prefetch=0,
            grid=(n_pad // tile_n,),
            in_specs=[
                pl.BlockSpec((4, tile_n), lambda i: (0, i)),
                # Constant block index -> Pallas skips the re-DMA across steps.
                pl.BlockSpec((lut_rows, l_pad), lambda i: (0, 0)),
            ],
            out_specs=pl.BlockSpec((3, tile_n), lambda i: (0, i)),
        ),
        compiler_params=pltpu.CompilerParams(
            dimension_semantics=("parallel",),
            vmem_limit_bytes=32 * 1024 * 1024),
    )(x_cm, lut_pk)

    # Same flat-index convention on write-back: (3, N) flat == (B, 3, W, H).
    output = out[:, :N].reshape(B, 3, W, H)
    return lut, output


def generator4dlut_identity_forward(lut_en, x):
    """Forward of Generator4DLUT_identity given its LUT parameter."""
    _, output = quadrilinear_interpolation_4d(lut_en, x)
    return output


def _reference(lut, x):
    """Pure-JAX reference with identical semantics."""
    B, _, W, H = x.shape
    dim = lut.shape[-1]
    binsize = 1.000001 / (dim - 1)
    inv_bin = jnp.float32(1.0 / binsize)
    N = B * W * H
    xf = x.reshape(4, N)
    ctx, r, g, b = xf[0], xf[1], xf[2], xf[3]
    rq, gq, bq = r * inv_bin, g * inv_bin, b * inv_bin
    r_i = jnp.floor(rq).astype(jnp.int32)
    g_i = jnp.floor(gq).astype(jnp.int32)
    b_i = jnp.floor(bq).astype(jnp.int32)
    r_d, g_d, b_d = rq - jnp.floor(rq), gq - jnp.floor(gq), bq - jnp.floor(bq)
    lutf = lut.reshape(3, 2, dim ** 3)           # (channel, context, b*g*r flat)
    out = jnp.zeros((3, N), jnp.float32)
    for dr in (0, 1):
        wr = r_d if dr else 1.0 - r_d
        for dg in (0, 1):
            wg = g_d if dg else 1.0 - g_d
            for db in (0, 1):
                wb = b_d if db else 1.0 - b_d
                w = wr * wg * wb
                idx = (r_i + dr) + (g_i + dg) * dim + (b_i + db) * dim * dim
                v0 = lutf[:, 0, idx]
                v1 = lutf[:, 1, idx]
                out = out + w[None, :] * ((1.0 - ctx)[None, :] * v0
                                          + ctx[None, :] * v1)
    return out.reshape(B, 3, W, H)


if __name__ == "__main__":
    key = jax.random.PRNGKey(0)
    k_lut, k_x = jax.random.split(key)

    B, W, H = 2, 16, 16
    dim = 9

    # Deterministic LUT init: identity mapping (duplicated over the 2 context bins)
    # plus a small perturbation so the context interpolation is exercised.
    grid = jnp.linspace(0.0, 1.0, dim, dtype=jnp.float32)
    rr = jnp.broadcast_to(grid[None, None, :], (dim, dim, dim))   # r fastest
    gg = jnp.broadcast_to(grid[None, :, None], (dim, dim, dim))
    bb = jnp.broadcast_to(grid[:, None, None], (dim, dim, dim))
    identity = jnp.stack([rr, gg, bb], axis=0)[:, None]           # (3,1,dim,dim,dim)
    identity = jnp.broadcast_to(identity, (3, 2, dim, dim, dim))
    lut = identity + 0.05 * jax.random.normal(k_lut, (3, 2, dim, dim, dim),
                                              dtype=jnp.float32)

    x = jax.random.uniform(k_x, (B, 4, W, H), dtype=jnp.float32,
                           minval=0.0, maxval=1.0)

    lut_out, out = quadrilinear_interpolation_4d(lut, x)
    out = jax.block_until_ready(out)

    ref = _reference(lut, x)
    np.testing.assert_allclose(np.asarray(out), np.asarray(ref),
                               rtol=1e-5, atol=1e-5)
    assert out.shape == (B, 3, W, H)
    assert lut_out.shape == lut.shape
    print("KERNEL_OK")
</pallas_src>

<mosaic_0001>
module attributes {stable_mosaic.version = 11 : i64} {
  func.func @_quad_kernel(%arg0: i32, %arg1: memref<4x256xf32, #tpu.memory_space<vmem>>, %arg2: memref<144x768xbf16, #tpu.memory_space<vmem>>, %arg3: memref<3x256xf32, #tpu.memory_space<vmem>>) attributes {dimension_semantics = [#tpu.dimension_semantics<parallel>], iteration_bounds = array<i64: 2>, scalar_prefetch = 0 : i64, scratch_operands = 0 : i64, tpu.core_type = #tpu.core_type<tc>, window_params = [{transform_indices = @transform_0, window_bounds = array<i64: 4, 256>}, {pipeline_mode = #tpu.pipeline_mode<synchronous>, transform_indices = @transform_1, window_bounds = array<i64: 144, 768>}, {transform_indices = @transform_2, window_bounds = array<i64: 3, 256>}]} {
    %c0 = arith.constant 0 : index
    %c0_0 = arith.constant 0 : index
    %0 = vector.load %arg1[%c0, %c0_0] : memref<4x256xf32, #tpu.memory_space<vmem>>, vector<4x256xf32>
    %1 = vector.extract_strided_slice %0 {offsets = [0, 0], sizes = [1, 256], strides = [1, 1]} : vector<4x256xf32> to vector<1x256xf32>
    %2 = vector.extract_strided_slice %0 {offsets = [1, 0], sizes = [1, 256], strides = [1, 1]} : vector<4x256xf32> to vector<1x256xf32>
    %cst = arith.constant 7.99999189 : f32
    %3 = vector.broadcast %cst : f32 to vector<1x256xf32>
    %4 = arith.mulf %2, %3 : vector<1x256xf32>
    %5 = vector.extract_strided_slice %0 {offsets = [2, 0], sizes = [1, 256], strides = [1, 1]} : vector<4x256xf32> to vector<1x256xf32>
    %cst_1 = arith.constant 7.99999189 : f32
    %6 = vector.broadcast %cst_1 : f32 to vector<1x256xf32>
    %7 = arith.mulf %5, %6 : vector<1x256xf32>
    %8 = vector.extract_strided_slice %0 {offsets = [3, 0], sizes = [1, 256], strides = [1, 1]} : vector<4x256xf32> to vector<1x256xf32>
    %cst_2 = arith.constant 7.99999189 : f32
    %9 = vector.broadcast %cst_2 : f32 to vector<1x256xf32>
    %10 = arith.mulf %8, %9 : vector<1x256xf32>
    %11 = math.floor %4 : vector<1x256xf32>
    %12 = math.floor %7 : vector<1x256xf32>
    %13 = math.floor %10 : vector<1x256xf32>
    %14 = arith.subf %4, %11 : vector<1x256xf32>
    %15 = arith.subf %7, %12 : vector<1x256xf32>
    %16 = arith.subf %10, %13 : vector<1x256xf32>
    %cst_3 = arith.constant 9.000000e+00 : f32
    %17 = vector.broadcast %cst_3 : f32 to vector<1x256xf32>
    %18 = arith.mulf %12, %17 : vector<1x256xf32>
    %19 = arith.addf %11, %18 : vector<1x256xf32>
    %cst_4 = arith.constant 8.100000e+01 : f32
    %20 = vector.broadcast %cst_4 : f32 to vector<1x256xf32>
    %21 = arith.mulf %13, %20 : vector<1x256xf32>
    %22 = arith.addf %19, %21 : vector<1x256xf32>
    %23 = arith.fptosi %22 : vector<1x256xf32> to vector<1x256xi32>
    %24 = tpu.iota {dimensions = array<i32: 0>} : vector<256x256xi32>
    %c0_i32 = arith.constant 0 : i32
    %25 = vector.broadcast %c0_i32 : i32 to vector<1x256xi32>
    %26 = arith.subi %23, %25 : vector<1x256xi32>
    %27 = vector.broadcast %26 : vector<1x256xi32> to vector<256x256xi32>
    %28 = arith.cmpi eq, %24, %27 : vector<256x256xi32>
    %29 = arith.extui %28 : vector<256x256xi1> to vector<256x256xi32>
    %30 = arith.sitofp %29 : vector<256x256xi32> to vector<256x256xf32>
    %31 = arith.truncf %30 : vector<256x256xf32> to vector<256x256xbf16>
    %c0_5 = arith.constant 0 : index
    %c0_6 = arith.constant 0 : index
    %32 = vector.load %arg2[%c0_5, %c0_6] : memref<144x768xbf16, #tpu.memory_space<vmem>>, vector<144x256xbf16>
    %cst_7 = arith.constant dense<0.000000e+00> : vector<144x256xf32>
    %33 = tpu.matmul %32, %31, %cst_7 {dimension_numbers = #tpu.dot_dimension_numbers<[1], [0], [0], [1], [0, 0, 1, 1], [], []>} : vector<144x256xbf16>, vector<256x256xbf16>, vector<144x256xf32> -> vector<144x256xf32>
    %c256_i32 = arith.constant 256 : i32
    %34 = vector.broadcast %c256_i32 : i32 to vector<1x256xi32>
    %35 = arith.subi %23, %34 : vector<1x256xi32>
    %36 = vector.broadcast %35 : vector<1x256xi32> to vector<256x256xi32>
    %37 = arith.cmpi eq, %24, %36 : vector<256x256xi32>
    %38 = arith.extui %37 : vector<256x256xi1> to vector<256x256xi32>
    %39 = arith.sitofp %38 : vector<256x256xi32> to vector<256x256xf32>
    %40 = arith.truncf %39 : vector<256x256xf32> to vector<256x256xbf16>
    %c0_8 = arith.constant 0 : index
    %c256 = arith.constant 256 : index
    %41 = vector.load %arg2[%c0_8, %c256] : memref<144x768xbf16, #tpu.memory_space<vmem>>, vector<144x256xbf16>
    %cst_9 = arith.constant dense<0.000000e+00> : vector<144x256xf32>
    %42 = tpu.matmul %41, %40, %cst_9 {dimension_numbers = #tpu.dot_dimension_numbers<[1], [0], [0], [1], [0, 0, 1, 1], [], []>} : vector<144x256xbf16>, vector<256x256xbf16>, vector<144x256xf32> -> vector<144x256xf32>
    %43 = arith.addf %33, %42 : vector<144x256xf32>
    %c512_i32 = arith.constant 512 : i32
    %44 = vector.broadcast %c512_i32 : i32 to vector<1x256xi32>
    %45 = arith.subi %23, %44 : vector<1x256xi32>
    %46 = vector.broadcast %45 : vector<1x256xi32> to vector<256x256xi32>
    %47 = arith.cmpi eq, %24, %46 : vector<256x256xi32>
    %48 = arith.extui %47 : vector<256x256xi1> to vector<256x256xi32>
    %49 = arith.sitofp %48 : vector<256x256xi32> to vector<256x256xf32>
    %50 = arith.truncf %49 : vector<256x256xf32> to vector<256x256xbf16>
    %c0_10 = arith.constant 0 : index
    %c512 = arith.constant 512 : index
    %51 = vector.load %arg2[%c0_10, %c512] : memref<144x768xbf16, #tpu.memory_space<vmem>>, vector<144x256xbf16>
    %cst_11 = arith.constant dense<0.000000e+00> : vector<144x256xf32>
    %52 = tpu.matmul %51, %50, %cst_11 {dimension_numbers = #tpu.dot_dimension_numbers<[1], [0], [0], [1], [0, 0, 1, 1], [], []>} : vector<144x256xbf16>, vector<256x256xbf16>, vector<144x256xf32> -> vector<144x256xf32>
    %53 = arith.addf %43, %52 : vector<144x256xf32>
    %54 = vector.extract_strided_slice %53 {offsets = [0, 0], sizes = [48, 256], strides = [1, 1]} : vector<144x256xf32> to vector<48x256xf32>
    %55 = vector.extract_strided_slice %53 {offsets = [48, 0], sizes = [48, 256], strides = [1, 1]} : vector<144x256xf32> to vector<48x256xf32>
    %56 = arith.addf %54, %55 : vector<48x256xf32>
    %57 = vector.extract_strided_slice %53 {offsets = [96, 0], sizes = [48, 256], strides = [1, 1]} : vector<144x256xf32> to vector<48x256xf32>
    %58 = arith.addf %56, %57 : vector<48x256xf32>
    %cst_12 = arith.constant 1.000000e+00 : f32
    %59 = vector.broadcast %cst_12 : f32 to vector<1x256xf32>
    %60 = arith.subf %59, %14 : vector<1x256xf32>
    %cst_13 = arith.constant 1.000000e+00 : f32
    %61 = vector.broadcast %cst_13 : f32 to vector<1x256xf32>
    %62 = arith.subf %61, %15 : vector<1x256xf32>
    %cst_14 = arith.constant 1.000000e+00 : f32
    %63 = vector.broadcast %cst_14 : f32 to vector<1x256xf32>
    %64 = arith.subf %63, %16 : vector<1x256xf32>
    %65 = vector.extract_strided_slice %58 {offsets = [0, 0], sizes = [6, 256], strides = [1, 1]} : vector<48x256xf32> to vector<6x256xf32>
    %66 = vector.extract_strided_slice %58 {offsets = [6, 0], sizes = [6, 256], strides = [1, 1]} : vector<48x256xf32> to vector<6x256xf32>
    %67 = vector.broadcast %60 : vector<1x256xf32> to vector<6x256xf32>
    %68 = arith.mulf %67, %65 : vector<6x256xf32>
    %69 = vector.broadcast %14 : vector<1x256xf32> to vector<6x256xf32>
    %70 = arith.mulf %69, %66 : vector<6x256xf32>
    %71 = arith.addf %68, %70 : vector<6x256xf32>
    %72 = vector.extract_strided_slice %58 {offsets = [12, 0], sizes = [6, 256], strides = [1, 1]} : vector<48x256xf32> to vector<6x256xf32>
    %73 = vector.extract_strided_slice %58 {offsets = [18, 0], sizes = [6, 256], strides = [1, 1]} : vector<48x256xf32> to vector<6x256xf32>
    %74 = vector.broadcast %60 : vector<1x256xf32> to vector<6x256xf32>
    %75 = arith.mulf %74, %72 : vector<6x256xf32>
    %76 = vector.broadcast %14 : vector<1x256xf32> to vector<6x256xf32>
    %77 = arith.mulf %76, %73 : vector<6x256xf32>
    %78 = arith.addf %75, %77 : vector<6x256xf32>
    %79 = vector.extract_strided_slice %58 {offsets = [24, 0], sizes = [6, 256], strides = [1, 1]} : vector<48x256xf32> to vector<6x256xf32>
    %80 = vector.extract_strided_slice %58 {offsets = [30, 0], sizes = [6, 256], strides = [1, 1]} : vector<48x256xf32> to vector<6x256xf32>
    %81 = vector.broadcast %60 : vector<1x256xf32> to vector<6x256xf32>
    %82 = arith.mulf %81, %79 : vector<6x256xf32>
    %83 = vector.broadcast %14 : vector<1x256xf32> to vector<6x256xf32>
    %84 = arith.mulf %83, %80 : vector<6x256xf32>
    %85 = arith.addf %82, %84 : vector<6x256xf32>
    %86 = vector.extract_strided_slice %58 {offsets = [36, 0], sizes = [6, 256], strides = [1, 1]} : vector<48x256xf32> to vector<6x256xf32>
    %87 = vector.extract_strided_slice %58 {offsets = [42, 0], sizes = [6, 256], strides = [1, 1]} : vector<48x256xf32> to vector<6x256xf32>
    %88 = vector.broadcast %60 : vector<1x256xf32> to vector<6x256xf32>
    %89 = arith.mulf %88, %86 : vector<6x256xf32>
    %90 = vector.broadcast %14 : vector<1x256xf32> to vector<6x256xf32>
    %91 = arith.mulf %90, %87 : vector<6x256xf32>
    %92 = arith.addf %89, %91 : vector<6x256xf32>
    %93 = vector.broadcast %62 : vector<1x256xf32> to vector<6x256xf32>
    %94 = arith.mulf %93, %71 : vector<6x256xf32>
    %95 = vector.broadcast %15 : vector<1x256xf32> to vector<6x256xf32>
    %96 = arith.mulf %95, %78 : vector<6x256xf32>
    %97 = arith.addf %94, %96 : vector<6x256xf32>
    %98 = vector.broadcast %62 : vector<1x256xf32> to vector<6x256xf32>
    %99 = arith.mulf %98, %85 : vector<6x256xf32>
    %100 = vector.broadcast %15 : vector<1x256xf32> to vector<6x256xf32>
    %101 = arith.mulf %100, %92 : vector<6x256xf32>
    %102 = arith.addf %99, %101 : vector<6x256xf32>
    %103 = vector.broadcast %64 : vector<1x256xf32> to vector<6x256xf32>
    %104 = arith.mulf %103, %97 : vector<6x256xf32>
    %105 = vector.broadcast %16 : vector<1x256xf32> to vector<6x256xf32>
    %106 = arith.mulf %105, %102 : vector<6x256xf32>
    %107 = arith.addf %104, %106 : vector<6x256xf32>
    %cst_15 = arith.constant 1.000000e+00 : f32
    %108 = vector.broadcast %cst_15 : f32 to vector<1x256xf32>
    %109 = arith.subf %108, %1 : vector<1x256xf32>
    %110 = vector.extract_strided_slice %107 {offsets = [0, 0], sizes = [3, 256], strides = [1, 1]} : vector<6x256xf32> to vector<3x256xf32>
    %111 = vector.broadcast %109 : vector<1x256xf32> to vector<3x256xf32>
    %112 = arith.mulf %111, %110 : vector<3x256xf32>
    %113 = vector.extract_strided_slice %107 {offsets = [3, 0], sizes = [3, 256], strides = [1, 1]} : vector<6x256xf32> to vector<3x256xf32>
    %114 = vector.broadcast %1 : vector<1x256xf32> to vector<3x256xf32>
    %115 = arith.mulf %114, %113 : vector<3x256xf32>
    %116 = arith.addf %112, %115 : vector<3x256xf32>
    %c0_16 = arith.constant 0 : index
    %c0_17 = arith.constant 0 : index
    %117 = vector.load %arg3[%c0_16, %c0_17] : memref<3x256xf32, #tpu.memory_space<vmem>>, vector<3x256xf32>
    tpu.vector_store %arg3[%c0_16, %c0_17], %116 {strides = array<i32>} : memref<3x256xf32, #tpu.memory_space<vmem>>, vector<3x256xf32>,
    return
  }
  func.func @transform_0(%arg0: i32) -> (i32, i32) {
    %c0_i32 = arith.constant 0 : i32
    %c0_i32_0 = arith.constant 0 : i32
    return %c0_i32, %arg0 : i32, i32
  }
  func.func @transform_1(%arg0: i32) -> (i32, i32) {
    %c0_i32 = arith.constant 0 : i32
    %c0_i32_0 = arith.constant 0 : i32
    %c0_i32_1 = arith.constant 0 : i32
    return %c0_i32, %c0_i32_0 : i32, i32
  }
  func.func @transform_2(%arg0: i32) -> (i32, i32) {
    %c0_i32 = arith.constant 0 : i32
    %c0_i32_0 = arith.constant 0 : i32
    return %c0_i32, %arg0 : i32, i32
  }
}

</mosaic_0001>

<llo_original>
// kernel: tpu_custom_call.1
$region0: #{tpu_custom_call.1}
  #allocation0 [shape = 'u32[]', space=smem, size = 0x4, offset = 0x4, fixed_abs, tag = 'smem constant byte address 0x4 - core index']
  #allocation1 [shape = 'u32[144,128]{1,0:T(1,128)}', space=vmem, size = 0x12000, scoped, tag = 'internal scratch']
  %s0 = inlined_call_operand.hbm [shape: f32[4,512], index: 0, kind: input, shape index: {}]
  %s1 = inlined_call_operand.hbm [shape: bf16[144,768], index: 1, kind: input, shape index: {}]
  %s2 = inlined_call_operand.hbm [shape: f32[3,512], index: 2, kind: output, shape index: {}]
  %s3 = sld [smem:[#allocation0]]
  $region49: #{tpu_custom_call.1} parent=0
    _
  %s5 = ssub.s32 1, %s3
  %s6 = scalar_select 0, %s5, %s3
  $region1: #{tpu_custom_call.1} parent=0
    #allocation2 [shape = 'u8[8192]{0}', space=vmem, size = 0x2000, scoped, tag = 'input window, operand 0']
    #allocation3 [shape = 's32[2]{0}', space=sflag, size = 0x8, scoped, tag = 'scoped memory for tpu_custom_call.1']
    #allocation4 [shape = 's32[2]{0}', space=sflag, size = 0x8, scoped, tag = 'scoped memory for tpu_custom_call.1']
    #allocation5 [shape = 'u8[221184]{0}', space=vmem, size = 0x36000, scoped, tag = 'input window, operand 1, single buffered']
    #allocation6 [shape = 's32[1]{0}', space=sflag, size = 0x4, scoped, tag = 'scoped memory for tpu_custom_call.1']
    #allocation7 [shape = 'u8[8192]{0}', space=vmem, size = 0x2000, scoped, tag = 'output window, operand 0']
    %7 = vsyncpa [#allocation3], 0
    %s8 = scalar_lea.sflag [#allocation3], 1
    %9 = vsyncpa %s8, 0
    %10 = vsyncpa [#allocation6], 0
    %11 = vsyncpa [#allocation4], 0
    %s12 = scalar_lea.sflag [#allocation4], 1
    %13 = vsyncpa %s12, 0
    loop: start=0, step=1, limit=4
    $region2: #{tpu_custom_call.1} parent=1 // loop_pre_header
      _
    $region3: #{tpu_custom_call.1} parent=1 // loop_header
      %s15 = sphi 0, %s19
      %p16 = scmp.ge.s32.totalorder %s15, 4
      %s25 = sphi 0, %s27
      %s28 = sphi 0, %s25
      %s29 = sphi 0, %s28
      %s45 = sphi 0, %s29
      %s49 = sphi 0, %s49
      %s51 = sphi 0, %s49
      %s52 = sphi 0, %s51
      %s66 = sphi 0, %s52
      %s72 = sphi 0, %s74
      %s75 = sphi 0, %s72
      %s76 = sphi 0, %s75
      %s92 = sphi 0, %s76
    $region4: #{tpu_custom_call.1} parent=1 // loop_header_branch
      %18 = sbr.rel (%p16) target = $region8
    $region5: #{tpu_custom_call.1} parent=1 // loop_body
      %s20 = ssub.s32 %s15, 1
      %s21 = ssub.s32 %s15, 2
      %s22 = sadd.s32 %s15, 1
      %s23 = ssub.s32 %s15, %s22
      %p24 = scmp.eq.s32.totalorder %s23, 0
      %s26 = sadd.s32 %s25, 1
      %s27 = scalar_select %p24, %s25, %s26
      %p30 = pneg %p24
      %p31 = scmp.eq.s32.totalorder %s15, 1
      %p32 = por %p30, %p31
      %p33 = scmp.ne.s32.totalorder %s25, %s28
      %p34 = scmp.eq.s32.totalorder %s15, 0
      %p35 = por %p33, %p34
      %p36 = scmp.ne.s32.totalorder %s25, %s28
      %p37 = scmp.eq.s32.totalorder %s20, 1
      %p38 = por %p36, %p37
      %p39 = scmp.ne.s32.totalorder %s28, %s29
      %p40 = scmp.eq.s32.totalorder %s20, 0
      %p41 = por %p39, %p40
      %p42 = scmp.ne.s32.totalorder %s28, %s29
      %p43 = scmp.eq.s32.totalorder %s21, 1
      %p44 = por %p42, %p43
      %p46 = scmp.ne.s32.totalorder %s29, %s45
      %p47 = scmp.eq.s32.totalorder %s21, 0
      %p48 = por %p46, %p47
      %s50 = sadd.s32 %s49, 1
      %p53 = scmp.eq.s32.totalorder %s15, 1
      %p54 = scmp.ne.s32.totalorder %s49, %s51
      %p55 = scmp.eq.s32.totalorder %s15, 0
      %p56 = por %p54, %p55
      %p57 = scmp.ne.s32.totalorder %s49, %s51
      %p58 = scmp.eq.s32.totalorder %s20, 1
      %p59 = por %p57, %p58
      %p60 = scmp.ne.s32.totalorder %s51, %s52
      %p61 = scmp.eq.s32.totalorder %s20, 0
      %p62 = por %p60, %p61
      %p63 = scmp.ne.s32.totalorder %s51, %s52
      %p64 = scmp.eq.s32.totalorder %s21, 1
      %p65 = por %p63, %p64
      %p67 = scmp.ne.s32.totalorder %s52, %s66
      %p68 = scmp.eq.s32.totalorder %s21, 0
      %p69 = por %p67, %p68
      %s70 = ssub.s32 %s15, %s22
      %p71 = scmp.eq.s32.totalorder %s70, 0
      %s73 = sadd.s32 %s72, 1
      %s74 = scalar_select %p71, %s72, %s73
      %p77 = pneg %p71
      %p78 = scmp.eq.s32.totalorder %s15, 1
      %p79 = por %p77, %p78
      %p80 = scmp.ne.s32.totalorder %s72, %s75
      %p81 = scmp.eq.s32.totalorder %s15, 0
      %p82 = por %p80, %p81
      %p83 = scmp.ne.s32.totalorder %s72, %s75
      %p84 = scmp.eq.s32.totalorder %s20, 1
      %p85 = por %p83, %p84
      %p86 = scmp.ne.s32.totalorder %s75, %s76
      %p87 = scmp.eq.s32.totalorder %s20, 0
      %p88 = por %p86, %p87
      %p89 = scmp.ne.s32.totalorder %s75, %s76
      %p90 = scmp.eq.s32.totalorder %s21, 1
      %p91 = por %p89, %p90
      %p93 = scmp.ne.s32.totalorder %s76, %s92
      %p94 = scmp.eq.s32.totalorder %s21, 0
      %p95 = por %p93, %p94
      %p96 = scmp.le.s32.totalorder 1, %s15
      %p97 = scmp.lt.s32.totalorder %s15, 3
      %p98 = pnand %p96, %p97
      %p99 = pneg %p98
      // Predicated region
      $region9: #{tpu_custom_call.1} parent=5 // pred_check
        _
      $region10: #{tpu_custom_call.1} parent=5 // pred_check_branch
        %101 = sbr.rel (%p98) target = $region12
      $region11: #{tpu_custom_call.1} parent=5 // pred_region
        %s102 = ssub.s32 %s15, 1
        // Predicated region
        $region13: #{tpu_custom_call.1} parent=11 // pred_check
          %p103 = pneg %p62
        $region14: #{tpu_custom_call.1} parent=11 // pred_check_branch
          %105 = sbr.rel (%p103) target = $region16
        $region15: #{tpu_custom_call.1} parent=11 // pred_region
          %s107 = ssub.s32 6912, 6912
          %108 = vsyncadd [#allocation6], %s107
          %s109 = sshll.u32 [#allocation5], 4
          %s110 = int_to_ptr.vmem [resolvable:$true] %s109
          %115 = dma.hbm_to_vmem [thread:$0]  %s1, 6912, %s110, [#allocation6], 384, 384, 24
        $region16: #{tpu_custom_call.1} parent=11 // pred_fallthru
          _
      $region12: #{tpu_custom_call.1} parent=5 // pred_fallthru
        _
      %p116 = scmp.lt.s32.totalorder %s15, 2
      // Predicated region
      $region17: #{tpu_custom_call.1} parent=5 // pred_check
        %p117 = pneg %p116
      $region18: #{tpu_custom_call.1} parent=5 // pred_check_branch
        %119 = sbr.rel (%p117) target = $region20
      $region19: #{tpu_custom_call.1} parent=5 // pred_region
        // Predicated region
        $region21: #{tpu_custom_call.1} parent=19 // pred_check
          %p120 = pneg %p35
        $region22: #{tpu_custom_call.1} parent=19 // pred_check_branch
          %122 = sbr.rel (%p120) target = $region24
        $region23: #{tpu_custom_call.1} parent=19 // pred_region
          %s123 = sand.u32 %s25, 1
          %s124 = scalar_lea.sflag [#allocation3], %s123
          %s125 = sand.u32 %s25, 1
          %s126 = smul.addr %s125, 8
          %s127 = scalar_lea.vmem [#allocation2], %s126
          %s128 = smul.u32 2, %s15
          %s130 = ssub.s32 128, 128
          %131 = vsyncadd %s124, %s130
          %s132 = smul.addr %s128, 64
          %s133 = scalar_lea.hbm %s0, %s132
          %s135 = sshll.u32 %s127, 4
          %s136 = int_to_ptr.vmem [resolvable:$true] %s135
          %138 = dma.hbm_to_vmem [thread:$0]  %s133, 128, %s136, %s124
        $region24: #{tpu_custom_call.1} parent=19 // pred_fallthru
          _
      $region20: #{tpu_custom_call.1} parent=5 // pred_fallthru
        _
      %p139 = scmp.le.s32.totalorder 1, %s15
      %p140 = scmp.lt.s32.totalorder %s15, 3
      %p141 = pnand %p139, %p140
      %p142 = pneg %p141
      // Predicated region
      $region25: #{tpu_custom_call.1} parent=5 // pred_check
        _
      $region26: #{tpu_custom_call.1} parent=5 // pred_check_branch
        %144 = sbr.rel (%p141) target = $region28
      $region27: #{tpu_custom_call.1} parent=5 // pred_region
        %s145 = ssub.s32 %s15, 1
        %s146 = sand.u32 %s28, 1
        %s147 = scalar_lea.sflag [#allocation3], %s146
        %s148 = sand.u32 %s28, 1
        %s149 = smul.addr %s148, 8
        %s150 = scalar_lea.vmem [#allocation2], %s149
        // Predicated region
        $region29: #{tpu_custom_call.1} parent=27 // pred_check
          %p151 = pneg %p41
        $region30: #{tpu_custom_call.1} parent=27 // pred_check_branch
          %153 = sbr.rel (%p151) target = $region32
        $region31: #{tpu_custom_call.1} parent=27 // pred_region
          %154 = dma.done %s147, 128
        $region32: #{tpu_custom_call.1} parent=27 // pred_fallthru
          _
        // Predicated region
        $region33: #{tpu_custom_call.1} parent=27 // pred_check
          %p155 = pneg %p62
        $region34: #{tpu_custom_call.1} parent=27 // pred_check_branch
          %157 = sbr.rel (%p155) target = $region36
        $region35: #{tpu_custom_call.1} parent=27 // pred_region
          %158 = dma.done [#allocation6], 6912
        $region36: #{tpu_custom_call.1} parent=27 // pred_fallthru
          _
        %s159 = sand.u32 %s28, 1
        %s160 = scalar_lea.sflag [#allocation3], %s159
        %s161 = sand.u32 %s28, 1
        %s162 = smul.addr %s161, 8
        %s163 = scalar_lea.vmem [#allocation2], %s162
        %p164 = pneg %p41
        %p165 = pneg %p38
        %p166 = pneg %p62
        %p167 = pneg %p59
        %p168 = pneg %p88
        %p169 = pneg %p85
        %s170 = sand.u32 %s75, 1
        %s171 = scalar_lea.sflag [#allocation4], %s170
        %s172 = sand.u32 %s75, 1
        %s173 = smul.addr %s172, 8
        %s174 = scalar_lea.vmem [#allocation7], %s173
        %s175 = smul.u32 2, %s20
        %s176 = smul.u32 2, %s20
        %v177 = vld [vmem:[%s150] sm:$0xff]
        %v178 = vmul.f32 %v177, 7.999992
        %v179 = vfloor.f32 %v178
        %v180 = vsub.f32 %v178, %v179
        %v181 = vmul.f32 %v179, 9.0
        %v183 = vrot.slane %v181, 5
        %v184 = vrot.slane %v183, 4
        %v186 = vadd.f32 %v179, %v184
        %v187 = vmul.f32 %v179, 81.0
        %v189 = vrot.slane %v187, 6
        %v190 = vrot.slane %v189, 4
        %v192 = vadd.f32 %v186, %v190
        %v193 = vcvt.f32.s32.to.zero.pseudo %v192
        %v194 = vlaneseq
        %v195 = vshrl.u32 %v194, 7
        %v196 = vadd.s32 %v195, 8
        %v197 = vadd.s32 %v195, 16
        %v198 = vadd.s32 %v195, 24
        %v199 = vadd.s32 %v195, 32
        %v200 = vadd.s32 %v195, 40
        %v201 = vadd.s32 %v195, 48
        %v202 = vadd.s32 %v195, 56
        %v203 = vadd.s32 %v195, 64
        %v204 = vadd.s32 %v195, 72
        %v205 = vadd.s32 %v195, 80
        %v206 = vadd.s32 %v195, 88
        %v207 = vadd.s32 %v195, 96
        %v208 = vadd.s32 %v195, 104
        %v209 = vadd.s32 %v195, 112
        %v210 = vadd.s32 %v195, 120
        %v211 = vadd.s32 %v195, 128
        %v212 = vadd.s32 %v195, 136
        %v213 = vadd.s32 %v195, 144
        %v214 = vadd.s32 %v195, 152
        %v215 = vadd.s32 %v195, 160
        %v216 = vadd.s32 %v195, 168
        %v217 = vadd.s32 %v195, 176
        %v218 = vadd.s32 %v195, 184
        %v219 = vadd.s32 %v195, 192
        %v220 = vadd.s32 %v195, 200
        %v221 = vadd.s32 %v195, 208
        %v222 = vadd.s32 %v195, 216
        %v223 = vadd.s32 %v195, 224
        %v224 = vadd.s32 %v195, 232
        %v225 = vadd.s32 %v195, 240
        %v226 = vadd.s32 %v195, 248
        %v227 = vlaneseq
        %v228 = vshrl.u32 %v227, 7
        %v229 = vsub.s32 1, %v228
        %v230 = vrot.slane %v193, %v229
        %v231 = vlaneseq
        %v232 = vshrl.u32 %v231, 7
        %v233 = vsub.s32 5, %v232
        %v234 = vrot.slane %v193, %v233
        %v235 = vlaneseq
        %v236 = vshrl.u32 %v235, 7
        %v237 = vsub.s32 1, %v236
        %v238 = vrot.slane %v230, %v237
        %v239 = vlaneseq
        %v240 = vshrl.u32 %v239, 7
        %v241 = vsub.s32 1, %v240
        %v242 = vrot.slane %v234, %v241
        %vm243 = vcmp.eq.s32.totalorder %v195, %v238
        %vm244 = vcmp.eq.s32.totalorder %v195, %v242
        %vm245 = vcmp.eq.s32.totalorder %v196, %v238
        %vm246 = vcmp.eq.s32.totalorder %v196, %v242
        %vm247 = vcmp.eq.s32.totalorder %v197, %v238
        %vm248 = vcmp.eq.s32.totalorder %v197, %v242
        %vm249 = vcmp.eq.s32.totalorder %v198, %v238
        %vm250 = vcmp.eq.s32.totalorder %v198, %v242
        %vm251 = vcmp.eq.s32.totalorder %v199, %v238
        %vm252 = vcmp.eq.s32.totalorder %v199, %v242
        %vm253 = vcmp.eq.s32.totalorder %v200, %v238
        %vm254 = vcmp.eq.s32.totalorder %v200, %v242
        %vm255 = vcmp.eq.s32.totalorder %v201, %v238
        %vm256 = vcmp.eq.s32.totalorder %v201, %v242
        %vm257 = vcmp.eq.s32.totalorder %v202, %v238
        %vm258 = vcmp.eq.s32.totalorder %v202, %v242
        %vm259 = vcmp.eq.s32.totalorder %v203, %v238
        %vm260 = vcmp.eq.s32.totalorder %v203, %v242
        %vm261 = vcmp.eq.s32.totalorder %v204, %v238
        %vm262 = vcmp.eq.s32.totalorder %v204, %v242
        %vm263 = vcmp.eq.s32.totalorder %v205, %v238
        %vm264 = vcmp.eq.s32.totalorder %v205, %v242
        %vm265 = vcmp.eq.s32.totalorder %v206, %v238
        %vm266 = vcmp.eq.s32.totalorder %v206, %v242
        %vm267 = vcmp.eq.s32.totalorder %v207, %v238
        %vm268 = vcmp.eq.s32.totalorder %v207, %v242
        %vm269 = vcmp.eq.s32.totalorder %v208, %v238
        %vm270 = vcmp.eq.s32.totalorder %v208, %v242
        %vm271 = vcmp.eq.s32.totalorder %v209, %v238
        %vm272 = vcmp.eq.s32.totalorder %v209, %v242
        %vm273 = vcmp.eq.s32.totalorder %v210, %v238
        %vm274 = vcmp.eq.s32.totalorder %v210, %v242
        %vm275 = vcmp.eq.s32.totalorder %v211, %v238
        %vm276 = vcmp.eq.s32.totalorder %v211, %v242
        %vm277 = vcmp.eq.s32.totalorder %v212, %v238
        %vm278 = vcmp.eq.s32.totalorder %v212, %v242
        %vm279 = vcmp.eq.s32.totalorder %v213, %v238
        %vm280 = vcmp.eq.s32.totalorder %v213, %v242
        %vm281 = vcmp.eq.s32.totalorder %v214, %v238
        %vm282 = vcmp.eq.s32.totalorder %v214, %v242
        %vm283 = vcmp.eq.s32.totalorder %v215, %v238
        %vm284 = vcmp.eq.s32.totalorder %v215, %v242
        %vm285 = vcmp.eq.s32.totalorder %v216, %v238
        %vm286 = vcmp.eq.s32.totalorder %v216, %v242
        %vm287 = vcmp.eq.s32.totalorder %v217, %v238
        %vm288 = vcmp.eq.s32.totalorder %v217, %v242
        %vm289 = vcmp.eq.s32.totalorder %v218, %v238
        %vm290 = vcmp.eq.s32.totalorder %v218, %v242
        %vm291 = vcmp.eq.s32.totalorder %v219, %v238
        %vm292 = vcmp.eq.s32.totalorder %v219, %v242
        %vm293 = vcmp.eq.s32.totalorder %v220, %v238
        %vm294 = vcmp.eq.s32.totalorder %v220, %v242
        %vm295 = vcmp.eq.s32.totalorder %v221, %v238
        %vm296 = vcmp.eq.s32.totalorder %v221, %v242
        %vm297 = vcmp.eq.s32.totalorder %v222, %v238
        %vm298 = vcmp.eq.s32.totalorder %v222, %v242
        %vm299 = vcmp.eq.s32.totalorder %v223, %v238
        %vm300 = vcmp.eq.s32.totalorder %v223, %v242
        %vm301 = vcmp.eq.s32.totalorder %v224, %v238
        %vm302 = vcmp.eq.s32.totalorder %v224, %v242
        %vm303 = vcmp.eq.s32.totalorder %v225, %v238
        %vm304 = vcmp.eq.s32.totalorder %v225, %v242
        %vm305 = vcmp.eq.s32.totalorder %v226, %v238
        %vm306 = vcmp.eq.s32.totalorder %v226, %v242
        %v307 = vsel %vm243, 1, 0
        %v308 = vsel %vm244, 1, 0
        %v309 = vsel %vm245, 1, 0
        %v310 = vsel %vm246, 1, 0
        %v311 = vsel %vm247, 1, 0
        %v312 = vsel %vm248, 1, 0
        %v313 = vsel %vm249, 1, 0
        %v314 = vsel %vm250, 1, 0
        %v315 = vsel %vm251, 1, 0
        %v316 = vsel %vm252, 1, 0
        %v317 = vsel %vm253, 1, 0
        %v318 = vsel %vm254, 1, 0
        %v319 = vsel %vm255, 1, 0
        %v320 = vsel %vm256, 1, 0
        %v321 = vsel %vm257, 1, 0
        %v322 = vsel %vm258, 1, 0
        %v323 = vsel %vm259, 1, 0
        %v324 = vsel %vm260, 1, 0
        %v325 = vsel %vm261, 1, 0
        %v326 = vsel %vm262, 1, 0
        %v327 = vsel %vm263, 1, 0
        %v328 = vsel %vm264, 1, 0
        %v329 = vsel %vm265, 1, 0
        %v330 = vsel %vm266, 1, 0
        %v331 = vsel %vm267, 1, 0
        %v332 = vsel %vm268, 1, 0
        %v333 = vsel %vm269, 1, 0
        %v334 = vsel %vm270, 1, 0
        %v335 = vsel %vm271, 1, 0
        %v336 = vsel %vm272, 1, 0
        %v337 = vsel %vm273, 1, 0
        %v338 = vsel %vm274, 1, 0
        %v339 = vsel %vm275, 1, 0
        %v340 = vsel %vm276, 1, 0
        %v341 = vsel %vm277, 1, 0
        %v342 = vsel %vm278, 1, 0
        %v343 = vsel %vm279, 1, 0
        %v344 = vsel %vm280, 1, 0
        %v345 = vsel %vm281, 1, 0
        %v346 = vsel %vm282, 1, 0
        %v347 = vsel %vm283, 1, 0
        %v348 = vsel %vm284, 1, 0
        %v349 = vsel %vm285, 1, 0
        %v350 = vsel %vm286, 1, 0
        %v351 = vsel %vm287, 1, 0
        %v352 = vsel %vm288, 1, 0
        %v353 = vsel %vm289, 1, 0
        %v354 = vsel %vm290, 1, 0
        %v355 = vsel %vm291, 1, 0
        %v356 = vsel %vm292, 1, 0
        %v357 = vsel %vm293, 1, 0
        %v358 = vsel %vm294, 1, 0
        %v359 = vsel %vm295, 1, 0
        %v360 = vsel %vm296, 1, 0
        %v361 = vsel %vm297, 1, 0
        %v362 = vsel %vm298, 1, 0
        %v363 = vsel %vm299, 1, 0
        %v364 = vsel %vm300, 1, 0
        %v365 = vsel %vm301, 1, 0
        %v366 = vsel %vm302, 1, 0
        %v367 = vsel %vm303, 1, 0
        %v368 = vsel %vm304, 1, 0
        %v369 = vsel %vm305, 1, 0
        %v370 = vsel %vm306, 1, 0
        %v371 = vcvt.s32.f32 %v307
        %v372 = vcvt.s32.f32 %v308
        %v373 = vcvt.s32.f32 %v309
        %v374 = vcvt.s32.f32 %v310
        %v375 = vcvt.s32.f32 %v311
        %v376 = vcvt.s32.f32 %v312
        %v377 = vcvt.s32.f32 %v313
        %v378 = vcvt.s32.f32 %v314
        %v379 = vcvt.s32.f32 %v315
        %v380 = vcvt.s32.f32 %v316
        %v381 = vcvt.s32.f32 %v317
        %v382 = vcvt.s32.f32 %v318
        %v383 = vcvt.s32.f32 %v319
        %v384 = vcvt.s32.f32 %v320
        %v385 = vcvt.s32.f32 %v321
        %v386 = vcvt.s32.f32 %v322
        %v387 = vcvt.s32.f32 %v323
        %v388 = vcvt.s32.f32 %v324
        %v389 = vcvt.s32.f32 %v325
        %v390 = vcvt.s32.f32 %v326
        %v391 = vcvt.s32.f32 %v327
        %v392 = vcvt.s32.f32 %v328
        %v393 = vcvt.s32.f32 %v329
        %v394 = vcvt.s32.f32 %v330
        %v395 = vcvt.s32.f32 %v331
        %v396 = vcvt.s32.f32 %v332
        %v397 = vcvt.s32.f32 %v333
        %v398 = vcvt.s32.f32 %v334
        %v399 = vcvt.s32.f32 %v335
        %v400 = vcvt.s32.f32 %v336
        %v401 = vcvt.s32.f32 %v337
        %v402 = vcvt.s32.f32 %v338
        %v403 = vcvt.s32.f32 %v339
        %v404 = vcvt.s32.f32 %v340
        %v405 = vcvt.s32.f32 %v341
        %v406 = vcvt.s32.f32 %v342
        %v407 = vcvt.s32.f32 %v343
        %v408 = vcvt.s32.f32 %v344
        %v409 = vcvt.s32.f32 %v345
        %v410 = vcvt.s32.f32 %v346
        %v411 = vcvt.s32.f32 %v347
        %v412 = vcvt.s32.f32 %v348
        %v413 = vcvt.s32.f32 %v349
        %v414 = vcvt.s32.f32 %v350
        %v415 = vcvt.s32.f32 %v351
        %v416 = vcvt.s32.f32 %v352
        %v417 = vcvt.s32.f32 %v353
        %v418 = vcvt.s32.f32 %v354
        %v419 = vcvt.s32.f32 %v355
        %v420 = vcvt.s32.f32 %v356
        %v421 = vcvt.s32.f32 %v357
        %v422 = vcvt.s32.f32 %v358
        %v423 = vcvt.s32.f32 %v359
        %v424 = vcvt.s32.f32 %v360
        %v425 = vcvt.s32.f32 %v361
        %v426 = vcvt.s32.f32 %v362
        %v427 = vcvt.s32.f32 %v363
        %v428 = vcvt.s32.f32 %v364
        %v429 = vcvt.s32.f32 %v365
        %v430 = vcvt.s32.f32 %v366
        %v431 = vcvt.s32.f32 %v367
        %v432 = vcvt.s32.f32 %v368
        %v433 = vcvt.s32.f32 %v369
        %v434 = vcvt.s32.f32 %v370
        %v435 = vpack.c.bf16 %v373, %v371
        %v436 = vpack.c.bf16 %v374, %v372
        %v437 = vpack.c.bf16 %v377, %v375
        %v438 = vpack.c.bf16 %v378, %v376
        %v439 = vpack.c.bf16 %v381, %v379
        %v440 = vpack.c.bf16 %v382, %v380
        %v441 = vpack.c.bf16 %v385, %v383
        %v442 = vpack.c.bf16 %v386, %v384
        %v443 = vpack.c.bf16 %v389, %v387
        %v444 = vpack.c.bf16 %v390, %v388
        %v445 = vpack.c.bf16 %v393, %v391
        %v446 = vpack.c.bf16 %v394, %v392
        %v447 = vpack.c.bf16 %v397, %v395
        %v448 = vpack.c.bf16 %v398, %v396
        %v449 = vpack.c.bf16 %v401, %v399
        %v450 = vpack.c.bf16 %v402, %v400
        %v451 = vpack.c.bf16 %v405, %v403
        %v452 = vpack.c.bf16 %v406, %v404
        %v453 = vpack.c.bf16 %v409, %v407
        %v454 = vpack.c.bf16 %v410, %v408
        %v455 = vpack.c.bf16 %v413, %v411
        %v456 = vpack.c.bf16 %v414, %v412
        %v457 = vpack.c.bf16 %v417, %v415
        %v458 = vpack.c.bf16 %v418, %v416
        %v459 = vpack.c.bf16 %v421, %v419
        %v460 = vpack.c.bf16 %v422, %v420
        %v461 = vpack.c.bf16 %v425, %v423
        %v462 = vpack.c.bf16 %v426, %v424
        %v463 = vpack.c.bf16 %v429, %v427
        %v464 = vpack.c.bf16 %v430, %v428
        %v465 = vpack.c.bf16 %v433, %v431
        %v466 = vpack.c.bf16 %v434, %v432
        %v467 = vld [vmem:[#allocation5] sm:$0xff]
        %v468 = vld [vmem:[#allocation5 + $0x18] sm:$0xff]
        %v469 = vld [vmem:[#allocation5 + $0x30] sm:$0xff]
        %v470 = vld [vmem:[#allocation5 + $0x48] sm:$0xff]
        %v471 = vld [vmem:[#allocation5 + $0x60] sm:$0xff]
        %v472 = vld [vmem:[#allocation5 + $0x78] sm:$0xff]
        %v473 = vld [vmem:[#allocation5 + $0x90] sm:$0xff]
        %v474 = vld [vmem:[#allocation5 + $0xa8] sm:$0xff]
        %v475 = vld [vmem:[#allocation5 + $0xc0] sm:$0xff]
        %v476 = vld [vmem:[#allocation5 + $0xd8] sm:$0xff]
        %v477 = vld [vmem:[#allocation5 + $0xf0] sm:$0xff]
        %v478 = vld [vmem:[#allocation5 + $0x108] sm:$0xff]
        %v479 = vld [vmem:[#allocation5 + $0x120] sm:$0xff]
        %v480 = vld [vmem:[#allocation5 + $0x138] sm:$0xff]
        %v481 = vld [vmem:[#allocation5 + $0x150] sm:$0xff]
        %v482 = vld [vmem:[#allocation5 + $0x168] sm:$0xff]
        %v483 = vld [vmem:[#allocation5 + $0x180] sm:$0xff]
        %v484 = vld [vmem:[#allocation5 + $0x198] sm:$0xff]
        %v485 = vsub.s32 %v193, 256
        %v486 = vlaneseq
        %v487 = vshrl.u32 %v486, 7
        %v488 = vsub.s32 1, %v487
        %v489 = vrot.slane %v485, %v488
        %v490 = vlaneseq
        %v491 = vshrl.u32 %v490, 7
        %v492 = vsub.s32 5, %v491
        %v493 = vrot.slane %v485, %v492
        %v494 = vlaneseq
        %v495 = vshrl.u32 %v494, 7
        %v496 = vsub.s32 1, %v495
        %v497 = vrot.slane %v489, %v496
        %v498 = vlaneseq
        %v499 = vshrl.u32 %v498, 7
        %v500 = vsub.s32 1, %v499
        %v501 = vrot.slane %v493, %v500
        %vm502 = vcmp.eq.s32.totalorder %v195, %v497
        %vm503 = vcmp.eq.s32.totalorder %v195, %v501
        %vm504 = vcmp.eq.s32.totalorder %v196, %v497
        %vm505 = vcmp.eq.s32.totalorder %v196, %v501
        %vm506 = vcmp.eq.s32.totalorder %v197, %v497
        %vm507 = vcmp.eq.s32.totalorder %v197, %v501
        %vm508 = vcmp.eq.s32.totalorder %v198, %v497
        %vm509 = vcmp.eq.s32.totalorder %v198, %v501
        %vm510 = vcmp.eq.s32.totalorder %v199, %v497
        %vm511 = vcmp.eq.s32.totalorder %v199, %v501
        %vm512 = vcmp.eq.s32.totalorder %v200, %v497
        %vm513 = vcmp.eq.s32.totalorder %v200, %v501
        %vm514 = vcmp.eq.s32.totalorder %v201, %v497
        %vm515 = vcmp.eq.s32.totalorder %v201, %v501
        %vm516 = vcmp.eq.s32.totalorder %v202, %v497
        %vm517 = vcmp.eq.s32.totalorder %v202, %v501
        %vm518 = vcmp.eq.s32.totalorder %v203, %v497
        %vm519 = vcmp.eq.s32.totalorder %v203, %v501
        %vm520 = vcmp.eq.s32.totalorder %v204, %v497
        %vm521 = vcmp.eq.s32.totalorder %v204, %v501
        %vm522 = vcmp.eq.s32.totalorder %v205, %v497
        %vm523 = vcmp.eq.s32.totalorder %v205, %v501
        %vm524 = vcmp.eq.s32.totalorder %v206, %v497
        %vm525 = vcmp.eq.s32.totalorder %v206, %v501
        %vm526 = vcmp.eq.s32.totalorder %v207, %v497
        %vm527 = vcmp.eq.s32.totalorder %v207, %v501
        %vm528 = vcmp.eq.s32.totalorder %v208, %v497
        %vm529 = vcmp.eq.s32.totalorder %v208, %v501
        %vm530 = vcmp.eq.s32.totalorder %v209, %v497
        %vm531 = vcmp.eq.s32.totalorder %v209, %v501
        %vm532 = vcmp.eq.s32.totalorder %v210, %v497
        %vm533 = vcmp.eq.s32.totalorder %v210, %v501
        %vm534 = vcmp.eq.s32.totalorder %v211, %v497
        %vm535 = vcmp.eq.s32.totalorder %v211, %v501
        %vm536 = vcmp.eq.s32.totalorder %v212, %v497
        %vm537 = vcmp.eq.s32.totalorder %v212, %v501
        %vm538 = vcmp.eq.s32.totalorder %v213, %v497
        %vm539 = vcmp.eq.s32.totalorder %v213, %v501
        %vm540 = vcmp.eq.s32.totalorder %v214, %v497
        %vm541 = vcmp.eq.s32.totalorder %v214, %v501
        %vm542 = vcmp.eq.s32.totalorder %v215, %v497
        %vm543 = vcmp.eq.s32.totalorder %v215, %v501
        %vm544 = vcmp.eq.s32.totalorder %v216, %v497
        %vm545 = vcmp.eq.s32.totalorder %v216, %v501
        %vm546 = vcmp.eq.s32.totalorder %v217, %v497
        %vm547 = vcmp.eq.s32.totalorder %v217, %v501
        %vm548 = vcmp.eq.s32.totalorder %v218, %v497
        %vm549 = vcmp.eq.s32.totalorder %v218, %v501
        %vm550 = vcmp.eq.s32.totalorder %v219, %v497
        %vm551 = vcmp.eq.s32.totalorder %v219, %v501
        %vm552 = vcmp.eq.s32.totalorder %v220, %v497
        %vm553 = vcmp.eq.s32.totalorder %v220, %v501
        %vm554 = vcmp.eq.s32.totalorder %v221, %v497
        %vm555 = vcmp.eq.s32.totalorder %v221, %v501
        %vm556 = vcmp.eq.s32.totalorder %v222, %v497
        %vm557 = vcmp.eq.s32.totalorder %v222, %v501
        %vm558 = vcmp.eq.s32.totalorder %v223, %v497
        %vm559 = vcmp.eq.s32.totalorder %v223, %v501
        %vm560 = vcmp.eq.s32.totalorder %v224, %v497
        %vm561 = vcmp.eq.s32.totalorder %v224, %v501
        %vm562 = vcmp.eq.s32.totalorder %v225, %v497
        %vm563 = vcmp.eq.s32.totalorder %v225, %v501
        %vm564 = vcmp.eq.s32.totalorder %v226, %v497
        %vm565 = vcmp.eq.s32.totalorder %v226, %v501
        %v566 = vsel %vm502, 1, 0
        %v567 = vsel %vm503, 1, 0
        %v568 = vsel %vm504, 1, 0
        %v569 = vsel %vm505, 1, 0
        %v570 = vsel %vm506, 1, 0
        %v571 = vsel %vm507, 1, 0
        %v572 = vsel %vm508, 1, 0
        %v573 = vsel %vm509, 1, 0
        %v574 = vsel %vm510, 1, 0
        %v575 = vsel %vm511, 1, 0
        %v576 = vsel %vm512, 1, 0
        %v577 = vsel %vm513, 1, 0
        %v578 = vsel %vm514, 1, 0
        %v579 = vsel %vm515, 1, 0
        %v580 = vsel %vm516, 1, 0
        %v581 = vsel %vm517, 1, 0
        %v582 = vsel %vm518, 1, 0
        %v583 = vsel %vm519, 1, 0
        %v584 = vsel %vm520, 1, 0
        %v585 = vsel %vm521, 1, 0
        %v586 = vsel %vm522, 1, 0
        %v587 = vsel %vm523, 1, 0
        %v588 = vsel %vm524, 1, 0
        %v589 = vsel %vm525, 1, 0
        %v590 = vsel %vm526, 1, 0
        %v591 = vsel %vm527, 1, 0
        %v592 = vsel %vm528, 1, 0
        %v593 = vsel %vm529, 1, 0
        %v594 = vsel %vm530, 1, 0
        %v595 = vsel %vm531, 1, 0
        %v596 = vsel %vm532, 1, 0
        %v597 = vsel %vm533, 1, 0
        %v598 = vsel %vm534, 1, 0
        %v599 = vsel %vm535, 1, 0
        %v600 = vsel %vm536, 1, 0
        %v601 = vsel %vm537, 1, 0
        %v602 = vsel %vm538, 1, 0
        %v603 = vsel %vm539, 1, 0
        %v604 = vsel %vm540, 1, 0
        %v605 = vsel %vm541, 1, 0
        %v606 = vsel %vm542, 1, 0
        %v607 = vsel %vm543, 1, 0
        %v608 = vsel %vm544, 1, 0
        %v609 = vsel %vm545, 1, 0
        %v610 = vsel %vm546, 1, 0
        %v611 = vsel %vm547, 1, 0
        %v612 = vsel %vm548, 1, 0
        %v613 = vsel %vm549, 1, 0
        %v614 = vsel %vm550, 1, 0
        %v615 = vsel %vm551, 1, 0
        %v616 = vsel %vm552, 1, 0
        %v617 = vsel %vm553, 1, 0
        %v618 = vsel %vm554, 1, 0
        %v619 = vsel %vm555, 1, 0
        %v620 = vsel %vm556, 1, 0
        %v621 = vsel %vm557, 1, 0
        %v622 = vsel %vm558, 1, 0
        %v623 = vsel %vm559, 1, 0
        %v624 = vsel %vm560, 1, 0
        %v625 = vsel %vm561, 1, 0
        %v626 = vsel %vm562, 1, 0
        %v627 = vsel %vm563, 1, 0
        %v628 = vsel %vm564, 1, 0
        %v629 = vsel %vm565, 1, 0
        %v630 = vcvt.s32.f32 %v566
        %v631 = vcvt.s32.f32 %v567
        %v632 = vcvt.s32.f32 %v568
        %v633 = vcvt.s32.f32 %v569
        %v634 = vcvt.s32.f32 %v570
        %v635 = vcvt.s32.f32 %v571
        %v636 = vcvt.s32.f32 %v572
        %v637 = vcvt.s32.f32 %v573
        %v638 = vcvt.s32.f32 %v574
        %v639 = vcvt.s32.f32 %v575
        %v640 = vcvt.s32.f32 %v576
        %v641 = vcvt.s32.f32 %v577
        %v642 = vcvt.s32.f32 %v578
        %v643 = vcvt.s32.f32 %v579
        %v644 = vcvt.s32.f32 %v580
        %v645 = vcvt.s32.f32 %v581
        %v646 = vcvt.s32.f32 %v582
        %v647 = vcvt.s32.f32 %v583
        %v648 = vcvt.s32.f32 %v584
        %v649 = vcvt.s32.f32 %v585
        %v650 = vcvt.s32.f32 %v586
        %v651 = vcvt.s32.f32 %v587
        %v652 = vcvt.s32.f32 %v588
        %v653 = vcvt.s32.f32 %v589
        %v654 = vcvt.s32.f32 %v590
        %v655 = vcvt.s32.f32 %v591
        %v656 = vcvt.s32.f32 %v592
        %v657 = vcvt.s32.f32 %v593
        %v658 = vcvt.s32.f32 %v594
        %v659 = vcvt.s32.f32 %v595
        %v660 = vcvt.s32.f32 %v596
        %v661 = vcvt.s32.f32 %v597
        %v662 = vcvt.s32.f32 %v598
        %v663 = vcvt.s32.f32 %v599
        %v664 = vcvt.s32.f32 %v600
        %v665 = vcvt.s32.f32 %v601
        %v666 = vcvt.s32.f32 %v602
        %v667 = vcvt.s32.f32 %v603
        %v668 = vcvt.s32.f32 %v604
        %v669 = vcvt.s32.f32 %v605
        %v670 = vcvt.s32.f32 %v606
        %v671 = vcvt.s32.f32 %v607
        %v672 = vcvt.s32.f32 %v608
        %v673 = vcvt.s32.f32 %v609
        %v674 = vcvt.s32.f32 %v610
        %v675 = vcvt.s32.f32 %v611
        %v676 = vcvt.s32.f32 %v612
        %v677 = vcvt.s32.f32 %v613
        %v678 = vcvt.s32.f32 %v614
        %v679 = vcvt.s32.f32 %v615
        %v680 = vcvt.s32.f32 %v616
        %v681 = vcvt.s32.f32 %v617
        %v682 = vcvt.s32.f32 %v618
        %v683 = vcvt.s32.f32 %v619
        %v684 = vcvt.s32.f32 %v620
        %v685 = vcvt.s32.f32 %v621
        %v686 = vcvt.s32.f32 %v622
        %v687 = vcvt.s32.f32 %v623
        %v688 = vcvt.s32.f32 %v624
        %v689 = vcvt.s32.f32 %v625
        %v690 = vcvt.s32.f32 %v626
        %v691 = vcvt.s32.f32 %v627
        %v692 = vcvt.s32.f32 %v628
        %v693 = vcvt.s32.f32 %v629
        %v694 = vpack.c.bf16 %v632, %v630
        %v695 = vpack.c.bf16 %v633, %v631
        %v696 = vpack.c.bf16 %v636, %v634
        %v697 = vpack.c.bf16 %v637, %v635
        %v698 = vpack.c.bf16 %v640, %v638
        %v699 = vpack.c.bf16 %v641, %v639
        %v700 = vpack.c.bf16 %v644, %v642
        %v701 = vpack.c.bf16 %v645, %v643
        %v702 = vpack.c.bf16 %v648, %v646
        %v703 = vpack.c.bf16 %v649, %v647
        %v704 = vpack.c.bf16 %v652, %v650
        %v705 = vpack.c.bf16 %v653, %v651
        %v706 = vpack.c.bf16 %v656, %v654
        %v707 = vpack.c.bf16 %v657, %v655
        %v708 = vpack.c.bf16 %v660, %v658
        %v709 = vpack.c.bf16 %v661, %v659
        %v710 = vpack.c.bf16 %v664, %v662
        %v711 = vpack.c.bf16 %v665, %v663
        %v712 = vpack.c.bf16 %v668, %v666
        %v713 = vpack.c.bf16 %v669, %v667
        %v714 = vpack.c.bf16 %v672, %v670
        %v715 = vpack.c.bf16 %v673, %v671
        %v716 = vpack.c.bf16 %v676, %v674
        %v717 = vpack.c.bf16 %v677, %v675
        %v718 = vpack.c.bf16 %v680, %v678
        %v719 = vpack.c.bf16 %v681, %v679
        %v720 = vpack.c.bf16 %v684, %v682
        %v721 = vpack.c.bf16 %v685, %v683
        %v722 = vpack.c.bf16 %v688, %v686
        %v723 = vpack.c.bf16 %v689, %v687
        %v724 = vpack.c.bf16 %v692, %v690
        %v725 = vpack.c.bf16 %v693, %v691
        %v726 = vld [vmem:[#allocation5 + $0x8] sm:$0xff]
        %v727 = vld [vmem:[#allocation5 + $0x20] sm:$0xff]
        %v728 = vld [vmem:[#allocation5 + $0x38] sm:$0xff]
        %v729 = vld [vmem:[#allocation5 + $0x50] sm:$0xff]
        %v730 = vld [vmem:[#allocation5 + $0x68] sm:$0xff]
        %v731 = vld [vmem:[#allocation5 + $0x80] sm:$0xff]
        %v732 = vld [vmem:[#allocation5 + $0x98] sm:$0xff]
        %v733 = vld [vmem:[#allocation5 + $0xb0] sm:$0xff]
        %v734 = vld [vmem:[#allocation5 + $0xc8] sm:$0xff]
        %v735 = vld [vmem:[#allocation5 + $0xe0] sm:$0xff]
        %v736 = vld [vmem:[#allocation5 + $0xf8] sm:$0xff]
        %v737 = vld [vmem:[#allocation5 + $0x110] sm:$0xff]
        %v738 = vld [vmem:[#allocation5 + $0x128] sm:$0xff]
        %v739 = vld [vmem:[#allocation5 + $0x140] sm:$0xff]
        %v740 = vld [vmem:[#allocation5 + $0x158] sm:$0xff]
        %v741 = vld [vmem:[#allocation5 + $0x170] sm:$0xff]
        %v742 = vld [vmem:[#allocation5 + $0x188] sm:$0xff]
        %v743 = vld [vmem:[#allocation5 + $0x1a0] sm:$0xff]
        %v762 = vunpack.c.l.b16 %v726
        %v763 = vunpack.c.h.b16 %v726
        %v764 = vunpack.c.l.b16 %v727
        %v765 = vunpack.c.h.b16 %v727
        %v766 = vunpack.c.l.b16 %v728
        %v767 = vunpack.c.h.b16 %v728
        %v768 = vunpack.c.l.b16 %v729
        %v769 = vunpack.c.h.b16 %v729
        %v770 = vunpack.c.l.b16 %v730
        %v771 = vunpack.c.h.b16 %v730
        %v772 = vunpack.c.l.b16 %v731
        %v773 = vunpack.c.h.b16 %v731
        %v774 = vunpack.c.l.b16 %v732
        %v775 = vunpack.c.h.b16 %v732
        %v776 = vunpack.c.l.b16 %v733
        %v777 = vunpack.c.h.b16 %v733
        %v778 = vunpack.c.l.b16 %v734
        %v779 = vunpack.c.h.b16 %v734
        %v780 = vunpack.c.l.b16 %v735
        %v781 = vunpack.c.h.b16 %v735
        %v782 = vunpack.c.l.b16 %v736
        %v783 = vunpack.c.h.b16 %v736
        %v784 = vunpack.c.l.b16 %v737
        %v785 = vunpack.c.h.b16 %v737
        %v786 = vunpack.c.l.b16 %v738
        %v787 = vunpack.c.h.b16 %v738
        %v788 = vunpack.c.l.b16 %v739
        %v789 = vunpack.c.h.b16 %v739
        %v790 = vunpack.c.l.b16 %v740
        %v791 = vunpack.c.h.b16 %v740
        %v792 = vunpack.c.l.b16 %v741
        %v793 = vunpack.c.h.b16 %v741
        %v794 = vunpack.c.l.b16 %v742
        %v795 = vunpack.c.h.b16 %v742
        %v796 = vunpack.c.l.b16 %v743
        %v797 = vunpack.c.h.b16 %v743
        %v798 = vpack.c.b16 %v764, %v762
        %v799 = vpack.c.b16 %v765, %v763
        %v800 = vpack.c.b16 %v768, %v766
        %v801 = vpack.c.b16 %v769, %v767
        %v802 = vpack.c.b16 %v772, %v770
        %v803 = vpack.c.b16 %v773, %v771
        %v804 = vpack.c.b16 %v776, %v774
        %v805 = vpack.c.b16 %v777, %v775
        %v806 = vpack.c.b16 %v780, %v778
        %v807 = vpack.c.b16 %v781, %v779
        %v808 = vpack.c.b16 %v784, %v782
        %v809 = vpack.c.b16 %v785, %v783
        %v810 = vpack.c.b16 %v788, %v786
        %v811 = vpack.c.b16 %v789, %v787
        %v812 = vpack.c.b16 %v792, %v790
        %v813 = vpack.c.b16 %v793, %v791
        %v814 = vpack.c.b16 %v796, %v794
        %v815 = vpack.c.b16 %v797, %v795
        %834 = vmatprep.subr.bf16.mxu0 %v709
        %835 = vmatpush1.bf16.msra.mxu0 %v708
        %836 = vmatprep.subr.bf16.mxu0 %v707
        %837 = vmatpush1.bf16.msra.mxu0 %v706
        %838 = vmatprep.subr.bf16.mxu0 %v705
        %839 = vmatpush1.bf16.msra.mxu0 %v704
        %840 = vmatprep.subr.bf16.mxu0 %v703
        %841 = vmatpush1.bf16.msra.mxu0 %v702
        %842 = vmatprep.subr.bf16.mxu0 %v701
        %843 = vmatpush1.bf16.msra.mxu0 %v700
        %844 = vmatprep.subr.bf16.mxu0 %v699
        %845 = vmatpush1.bf16.msra.mxu0 %v698
        %846 = vmatprep.subr.bf16.mxu0 %v697
        %847 = vmatpush1.bf16.msra.mxu0 %v696
        %848 = vmatprep.subr.bf16.mxu0 %v695
        %849 = vmatpush1.bf16.msra.mxu0 %v694
        %850 = vmatprep.subr.bf16.mxu0 %v725
        %851 = vmatpush2.bf16.msra.mxu0 %v724
        %852 = vmatprep.subr.bf16.mxu0 %v723
        %853 = vmatpush2.bf16.msra.mxu0 %v722
        %854 = vmatprep.subr.bf16.mxu0 %v721
        %855 = vmatpush2.bf16.msra.mxu0 %v720
        %856 = vmatprep.subr.bf16.mxu0 %v719
        %857 = vmatpush2.bf16.msra.mxu0 %v718
        %858 = vmatprep.subr.bf16.mxu0 %v717
        %859 = vmatpush2.bf16.msra.mxu0 %v716
        %860 = vmatprep.subr.bf16.mxu0 %v715
        %861 = vmatpush2.bf16.msra.mxu0 %v714
        %862 = vmatprep.subr.bf16.mxu0 %v713
        %863 = vmatpush2.bf16.msra.mxu0 %v712
        %864 = vmatprep.subr.bf16.mxu0 %v711
        %865 = vmatpush2.bf16.msra.mxu0 %v710
        %866 = vmatprep.mubr.bf16.mxu0 %v799
        %867 = vmatmul.mubr.bf16.gmra.mxu0 %v798
        %v868 = vpop.f32.mrf.mxu0
        %v869 = vadd.f32 0.0, %v868
        %v870 = vpop.f32.mrf.mxu0
        %v871 = vadd.f32 0.0, %v870
        %v872 = vpop.f32.mrf.mxu0
        %v873 = vadd.f32 0.0, %v872
        %v874 = vpop.f32.mrf.mxu0
        %v875 = vadd.f32 0.0, %v874
        %876 = vmatprep.mubr.bf16.mxu0 %v801
        %877 = vmatmul.mubr.bf16.gmra.mxu0 %v800
        %v878 = vpop.f32.mrf.mxu0
        %v879 = vadd.f32 0.0, %v878
        %v880 = vpop.f32.mrf.mxu0
        %v881 = vadd.f32 0.0, %v880
        %v882 = vpop.f32.mrf.mxu0
        %v883 = vadd.f32 0.0, %v882
        %v884 = vpop.f32.mrf.mxu0
        %v885 = vadd.f32 0.0, %v884
        %886 = vmatprep.mubr.bf16.mxu0 %v803
        %887 = vmatmul.mubr.bf16.gmra.mxu0 %v802
        %v888 = vpop.f32.mrf.mxu0
        %v889 = vadd.f32 0.0, %v888
        %v890 = vpop.f32.mrf.mxu0
        %v891 = vadd.f32 0.0, %v890
        %v892 = vpop.f32.mrf.mxu0
        %v893 = vadd.f32 0.0, %v892
        %v894 = vpop.f32.mrf.mxu0
        %v895 = vadd.f32 0.0, %v894
        %896 = vmatprep.mubr.bf16.mxu0 %v805
        %897 = vmatmul.mubr.bf16.gmra.mxu0 %v804
        %v898 = vpop.f32.mrf.mxu0
        %v899 = vadd.f32 0.0, %v898
        %v900 = vpop.f32.mrf.mxu0
        %v901 = vadd.f32 0.0, %v900
        %v902 = vpop.f32.mrf.mxu0
        %v903 = vadd.f32 0.0, %v902
        %v904 = vpop.f32.mrf.mxu0
        %v905 = vadd.f32 0.0, %v904
        %906 = vmatprep.mubr.bf16.mxu0 %v807
        %907 = vmatmul.mubr.bf16.gmra.mxu0 %v806
        %v908 = vpop.f32.mrf.mxu0
        %v909 = vadd.f32 0.0, %v908
        %v910 = vpop.f32.mrf.mxu0
        %v911 = vadd.f32 0.0, %v910
        %v912 = vpop.f32.mrf.mxu0
        %v913 = vadd.f32 0.0, %v912
        %v914 = vpop.f32.mrf.mxu0
        %v915 = vadd.f32 0.0, %v914
        %916 = vmatprep.mubr.bf16.mxu0 %v809
        %917 = vmatmul.mubr.bf16.gmra.mxu0 %v808
        %v918 = vpop.f32.mrf.mxu0
        %v919 = vadd.f32 0.0, %v918
        %v920 = vpop.f32.mrf.mxu0
        %v921 = vadd.f32 0.0, %v920
        %v922 = vpop.f32.mrf.mxu0
        %v923 = vadd.f32 0.0, %v922
        %v924 = vpop.f32.mrf.mxu0
        %v925 = vadd.f32 0.0, %v924
        %926 = vmatprep.mubr.bf16.mxu0 %v811
        %927 = vmatmul.mubr.bf16.gmra.mxu0 %v810
        %v928 = vpop.f32.mrf.mxu0
        %v929 = vadd.f32 0.0, %v928
        %v930 = vpop.f32.mrf.mxu0
        %v931 = vadd.f32 0.0, %v930
        %v932 = vpop.f32.mrf.mxu0
        %v933 = vadd.f32 0.0, %v932
        %v934 = vpop.f32.mrf.mxu0
        %v935 = vadd.f32 0.0, %v934
        %936 = vmatprep.mubr.bf16.mxu0 %v813
        %937 = vmatmul.mubr.bf16.gmra.mxu0 %v812
        %v938 = vpop.f32.mrf.mxu0
        %v939 = vadd.f32 0.0, %v938
        %v940 = vpop.f32.mrf.mxu0
        %v941 = vadd.f32 0.0, %v940
        %v942 = vpop.f32.mrf.mxu0
        %v943 = vadd.f32 0.0, %v942
        %v944 = vpop.f32.mrf.mxu0
        %v945 = vadd.f32 0.0, %v944
        %946 = vmatprep.mubr.bf16.mxu0 %v815
        %947 = vmatmul.mubr.bf16.gmra.mxu0 %v814
        %v948 = vpop.f32.mrf.mxu0
        %v949 = vadd.f32 0.0, %v948
        %v950 = vpop.f32.mrf.mxu0
        %v951 = vadd.f32 0.0, %v950
        %v952 = vpop.f32.mrf.mxu0
        %v953 = vadd.f32 0.0, %v952
        %v954 = vpop.f32.mrf.mxu0
        %v955 = vadd.f32 0.0, %v954
        %956 = vdwg.mxu0
        %v975 = vunpack.c.l.b16 %v467
        %v976 = vunpack.c.h.b16 %v467
        %v977 = vunpack.c.l.b16 %v468
        %v978 = vunpack.c.h.b16 %v468
        %v979 = vunpack.c.l.b16 %v469
        %v980 = vunpack.c.h.b16 %v469
        %v981 = vunpack.c.l.b16 %v470
        %v982 = vunpack.c.h.b16 %v470
        %v983 = vunpack.c.l.b16 %v471
        %v984 = vunpack.c.h.b16 %v471
        %v985 = vunpack.c.l.b16 %v472
        %v986 = vunpack.c.h.b16 %v472
        %v987 = vunpack.c.l.b16 %v473
        %v988 = vunpack.c.h.b16 %v473
        %v989 = vunpack.c.l.b16 %v474
        %v990 = vunpack.c.h.b16 %v474
        %v991 = vunpack.c.l.b16 %v475
        %v992 = vunpack.c.h.b16 %v475
        %v993 = vunpack.c.l.b16 %v476
        %v994 = vunpack.c.h.b16 %v476
        %v995 = vunpack.c.l.b16 %v477
        %v996 = vunpack.c.h.b16 %v477
        %v997 = vunpack.c.l.b16 %v478
        %v998 = vunpack.c.h.b16 %v478
        %v999 = vunpack.c.l.b16 %v479
        %v1000 = vunpack.c.h.b16 %v479
        %v1001 = vunpack.c.l.b16 %v480
        %v1002 = vunpack.c.h.b16 %v480
        %v1003 = vunpack.c.l.b16 %v481
        %v1004 = vunpack.c.h.b16 %v481
        %v1005 = vunpack.c.l.b16 %v482
        %v1006 = vunpack.c.h.b16 %v482
        %v1007 = vunpack.c.l.b16 %v483
        %v1008 = vunpack.c.h.b16 %v483
        %v1009 = vunpack.c.l.b16 %v484
        %v1010 = vunpack.c.h.b16 %v484
        %v1011 = vpack.c.b16 %v977, %v975
        %v1012 = vpack.c.b16 %v978, %v976
        %v1013 = vpack.c.b16 %v981, %v979
        %v1014 = vpack.c.b16 %v982, %v980
        %v1015 = vpack.c.b16 %v985, %v983
        %v1016 = vpack.c.b16 %v986, %v984
        %v1017 = vpack.c.b16 %v989, %v987
        %v1018 = vpack.c.b16 %v990, %v988
        %v1019 = vpack.c.b16 %v993, %v991
        %v1020 = vpack.c.b16 %v994, %v992
        %v1021 = vpack.c.b16 %v997, %v995
        %v1022 = vpack.c.b16 %v998, %v996
        %v1023 = vpack.c.b16 %v1001, %v999
        %v1024 = vpack.c.b16 %v1002, %v1000
        %v1025 = vpack.c.b16 %v1005, %v1003
        %v1026 = vpack.c.b16 %v1006, %v1004
        %v1027 = vpack.c.b16 %v1009, %v1007
        %v1028 = vpack.c.b16 %v1010, %v1008
        %1047 = vmatprep.subr.bf16.mxu0 %v450
        %1048 = vmatpush1.bf16.msra.mxu0 %v449
        %1049 = vmatprep.subr.bf16.mxu0 %v448
        %1050 = vmatpush1.bf16.msra.mxu0 %v447
        %1051 = vmatprep.subr.bf16.mxu0 %v446
        %1052 = vmatpush1.bf16.msra.mxu0 %v445
        %1053 = vmatprep.subr.bf16.mxu0 %v444
        %1054 = vmatpush1.bf16.msra.mxu0 %v443
        %1055 = vmatprep.subr.bf16.mxu0 %v442
        %1056 = vmatpush1.bf16.msra.mxu0 %v441
        %1057 = vmatprep.subr.bf16.mxu0 %v440
        %1058 = vmatpush1.bf16.msra.mxu0 %v439
        %1059 = vmatprep.subr.bf16.mxu0 %v438
        %1060 = vmatpush1.bf16.msra.mxu0 %v437
        %1061 = vmatprep.subr.bf16.mxu0 %v436
        %1062 = vmatpush1.bf16.msra.mxu0 %v435
        %1063 = vmatprep.subr.bf16.mxu0 %v466
        %1064 = vmatpush2.bf16.msra.mxu0 %v465
        %1065 = vmatprep.subr.bf16.mxu0 %v464
        %1066 = vmatpush2.bf16.msra.mxu0 %v463
        %1067 = vmatprep.subr.bf16.mxu0 %v462
        %1068 = vmatpush2.bf16.msra.mxu0 %v461
        %1069 = vmatprep.subr.bf16.mxu0 %v460
        %1070 = vmatpush2.bf16.msra.mxu0 %v459
        %1071 = vmatprep.subr.bf16.mxu0 %v458
        %1072 = vmatpush2.bf16.msra.mxu0 %v457
        %1073 = vmatprep.subr.bf16.mxu0 %v456
        %1074 = vmatpush2.bf16.msra.mxu0 %v455
        %1075 = vmatprep.subr.bf16.mxu0 %v454
        %1076 = vmatpush2.bf16.msra.mxu0 %v453
        %1077 = vmatprep.subr.bf16.mxu0 %v452
        %1078 = vmatpush2.bf16.msra.mxu0 %v451
        %1079 = vmatprep.mubr.bf16.mxu0 %v1012
        %1080 = vmatmul.mubr.bf16.gmra.mxu0 %v1011
        %v1081 = vpop.f32.mrf.mxu0
        %v1082 = vadd.f32 %v869, %v1081
        %v1083 = vpop.f32.mrf.mxu0
        %v1084 = vadd.f32 %v871, %v1083
        %v1085 = vpop.f32.mrf.mxu0
        %v1086 = vadd.f32 %v873, %v1085
        %v1087 = vpop.f32.mrf.mxu0
        %v1088 = vadd.f32 %v875, %v1087
        %1089 = vmatprep.mubr.bf16.mxu0 %v1014
        %1090 = vmatmul.mubr.bf16.gmra.mxu0 %v1013
        %v1091 = vpop.f32.mrf.mxu0
        %v1092 = vadd.f32 %v879, %v1091
        %v1093 = vpop.f32.mrf.mxu0
        %v1094 = vadd.f32 %v881, %v1093
        %v1095 = vpop.f32.mrf.mxu0
        %v1096 = vadd.f32 %v883, %v1095
        %v1097 = vpop.f32.mrf.mxu0
        %v1098 = vadd.f32 %v885, %v1097
        %1099 = vmatprep.mubr.bf16.mxu0 %v1016
        %1100 = vmatmul.mubr.bf16.gmra.mxu0 %v1015
        %v1101 = vpop.f32.mrf.mxu0
        %v1102 = vadd.f32 %v889, %v1101
        %v1103 = vpop.f32.mrf.mxu0
        %v1104 = vadd.f32 %v891, %v1103
        %v1105 = vpop.f32.mrf.mxu0
        %v1106 = vadd.f32 %v893, %v1105
        %v1107 = vpop.f32.mrf.mxu0
        %v1108 = vadd.f32 %v895, %v1107
        %1109 = vmatprep.mubr.bf16.mxu0 %v1018
        %1110 = vmatmul.mubr.bf16.gmra.mxu0 %v1017
        %v1111 = vpop.f32.mrf.mxu0
        %v1112 = vadd.f32 %v899, %v1111
        %v1113 = vpop.f32.mrf.mxu0
        %v1114 = vadd.f32 %v901, %v1113
        %v1115 = vpop.f32.mrf.mxu0
        %v1116 = vadd.f32 %v903, %v1115
        %v1117 = vpop.f32.mrf.mxu0
        %v1118 = vadd.f32 %v905, %v1117
        %1119 = vmatprep.mubr.bf16.mxu0 %v1020
        %1120 = vmatmul.mubr.bf16.gmra.mxu0 %v1019
        %v1121 = vpop.f32.mrf.mxu0
        %v1122 = vadd.f32 %v909, %v1121
        %v1123 = vpop.f32.mrf.mxu0
        %v1124 = vadd.f32 %v911, %v1123
        %v1125 = vpop.f32.mrf.mxu0
        %v1126 = vadd.f32 %v913, %v1125
        %v1127 = vpop.f32.mrf.mxu0
        %v1128 = vadd.f32 %v915, %v1127
        %1129 = vmatprep.mubr.bf16.mxu0 %v1022
        %1130 = vmatmul.mubr.bf16.gmra.mxu0 %v1021
        %v1131 = vpop.f32.mrf.mxu0
        %v1132 = vadd.f32 %v919, %v1131
        %v1133 = vpop.f32.mrf.mxu0
        %v1134 = vadd.f32 %v921, %v1133
        %v1135 = vpop.f32.mrf.mxu0
        %v1136 = vadd.f32 %v923, %v1135
        %v1137 = vpop.f32.mrf.mxu0
        %v1138 = vadd.f32 %v925, %v1137
        %1139 = vmatprep.mubr.bf16.mxu0 %v1024
        %1140 = vmatmul.mubr.bf16.gmra.mxu0 %v1023
        %v1141 = vpop.f32.mrf.mxu0
        %v1142 = vadd.f32 %v929, %v1141
        %v1143 = vpop.f32.mrf.mxu0
        %v1144 = vadd.f32 %v931, %v1143
        %v1145 = vpop.f32.mrf.mxu0
        %v1146 = vadd.f32 %v933, %v1145
        %v1147 = vpop.f32.mrf.mxu0
        %v1148 = vadd.f32 %v935, %v1147
        %1149 = vmatprep.mubr.bf16.mxu0 %v1026
        %1150 = vmatmul.mubr.bf16.gmra.mxu0 %v1025
        %v1151 = vpop.f32.mrf.mxu0
        %v1152 = vadd.f32 %v939, %v1151
        %v1153 = vpop.f32.mrf.mxu0
        %v1154 = vadd.f32 %v941, %v1153
        %v1155 = vpop.f32.mrf.mxu0
        %v1156 = vadd.f32 %v943, %v1155
        %v1157 = vpop.f32.mrf.mxu0
        %v1158 = vadd.f32 %v945, %v1157
        %1159 = vmatprep.mubr.bf16.mxu0 %v1028
        %1160 = vmatmul.mubr.bf16.gmra.mxu0 %v1027
        %v1161 = vpop.f32.mrf.mxu0
        %v1162 = vadd.f32 %v949, %v1161
        %v1163 = vpop.f32.mrf.mxu0
        %v1164 = vadd.f32 %v951, %v1163
        %v1165 = vpop.f32.mrf.mxu0
        %v1166 = vadd.f32 %v953, %v1165
        %v1167 = vpop.f32.mrf.mxu0
        %v1168 = vadd.f32 %v955, %v1167
        %1169 = vdwg.mxu0
        %v1170 = vsub.s32 %v193, 512
        %v1171 = vlaneseq
        %v1172 = vshrl.u32 %v1171, 7
        %v1173 = vsub.s32 1, %v1172
        %v1174 = vrot.slane %v1170, %v1173
        %v1175 = vlaneseq
        %v1176 = vshrl.u32 %v1175, 7
        %v1177 = vsub.s32 5, %v1176
        %v1178 = vrot.slane %v1170, %v1177
        %v1179 = vlaneseq
        %v1180 = vshrl.u32 %v1179, 7
        %v1181 = vsub.s32 1, %v1180
        %v1182 = vrot.slane %v1174, %v1181
        %v1183 = vlaneseq
        %v1184 = vshrl.u32 %v1183, 7
        %v1185 = vsub.s32 1, %v1184
        %v1186 = vrot.slane %v1178, %v1185
        %vm1187 = vcmp.eq.s32.totalorder %v195, %v1182
        %vm1188 = vcmp.eq.s32.totalorder %v195, %v1186
        %vm1189 = vcmp.eq.s32.totalorder %v196, %v1182
        %vm1190 = vcmp.eq.s32.totalorder %v196, %v1186
        %vm1191 = vcmp.eq.s32.totalorder %v197, %v1182
        %vm1192 = vcmp.eq.s32.totalorder %v197, %v1186
        %vm1193 = vcmp.eq.s32.totalorder %v198, %v1182
        %vm1194 = vcmp.eq.s32.totalorder %v198, %v1186
        %vm1195 = vcmp.eq.s32.totalorder %v199, %v1182
        %vm1196 = vcmp.eq.s32.totalorder %v199, %v1186
        %vm1197 = vcmp.eq.s32.totalorder %v200, %v1182
        %vm1198 = vcmp.eq.s32.totalorder %v200, %v1186
        %vm1199 = vcmp.eq.s32.totalorder %v201, %v1182
        %vm1200 = vcmp.eq.s32.totalorder %v201, %v1186
        %vm1201 = vcmp.eq.s32.totalorder %v202, %v1182
        %vm1202 = vcmp.eq.s32.totalorder %v202, %v1186
        %vm1203 = vcmp.eq.s32.totalorder %v203, %v1182
        %vm1204 = vcmp.eq.s32.totalorder %v203, %v1186
        %vm1205 = vcmp.eq.s32.totalorder %v204, %v1182
        %vm1206 = vcmp.eq.s32.totalorder %v204, %v1186
        %vm1207 = vcmp.eq.s32.totalorder %v205, %v1182
        %vm1208 = vcmp.eq.s32.totalorder %v205, %v1186
        %vm1209 = vcmp.eq.s32.totalorder %v206, %v1182
        %vm1210 = vcmp.eq.s32.totalorder %v206, %v1186
        %vm1211 = vcmp.eq.s32.totalorder %v207, %v1182
        %vm1212 = vcmp.eq.s32.totalorder %v207, %v1186
        %vm1213 = vcmp.eq.s32.totalorder %v208, %v1182
        %vm1214 = vcmp.eq.s32.totalorder %v208, %v1186
        %vm1215 = vcmp.eq.s32.totalorder %v209, %v1182
        %vm1216 = vcmp.eq.s32.totalorder %v209, %v1186
        %vm1217 = vcmp.eq.s32.totalorder %v210, %v1182
        %vm1218 = vcmp.eq.s32.totalorder %v210, %v1186
        %vm1219 = vcmp.eq.s32.totalorder %v211, %v1182
        %vm1220 = vcmp.eq.s32.totalorder %v211, %v1186
        %vm1221 = vcmp.eq.s32.totalorder %v212, %v1182
        %vm1222 = vcmp.eq.s32.totalorder %v212, %v1186
        %vm1223 = vcmp.eq.s32.totalorder %v213, %v1182
        %vm1224 = vcmp.eq.s32.totalorder %v213, %v1186
        %vm1225 = vcmp.eq.s32.totalorder %v214, %v1182
        %vm1226 = vcmp.eq.s32.totalorder %v214, %v1186
        %vm1227 = vcmp.eq.s32.totalorder %v215, %v1182
        %vm1228 = vcmp.eq.s32.totalorder %v215, %v1186
        %vm1229 = vcmp.eq.s32.totalorder %v216, %v1182
        %vm1230 = vcmp.eq.s32.totalorder %v216, %v1186
        %vm1231 = vcmp.eq.s32.totalorder %v217, %v1182
        %vm1232 = vcmp.eq.s32.totalorder %v217, %v1186
        %vm1233 = vcmp.eq.s32.totalorder %v218, %v1182
        %vm1234 = vcmp.eq.s32.totalorder %v218, %v1186
        %vm1235 = vcmp.eq.s32.totalorder %v219, %v1182
        %vm1236 = vcmp.eq.s32.totalorder %v219, %v1186
        %vm1237 = vcmp.eq.s32.totalorder %v220, %v1182
        %vm1238 = vcmp.eq.s32.totalorder %v220, %v1186
        %vm1239 = vcmp.eq.s32.totalorder %v221, %v1182
        %vm1240 = vcmp.eq.s32.totalorder %v221, %v1186
        %vm1241 = vcmp.eq.s32.totalorder %v222, %v1182
        %vm1242 = vcmp.eq.s32.totalorder %v222, %v1186
        %vm1243 = vcmp.eq.s32.totalorder %v223, %v1182
        %vm1244 = vcmp.eq.s32.totalorder %v223, %v1186
        %vm1245 = vcmp.eq.s32.totalorder %v224, %v1182
        %vm1246 = vcmp.eq.s32.totalorder %v224, %v1186
        %vm1247 = vcmp.eq.s32.totalorder %v225, %v1182
        %vm1248 = vcmp.eq.s32.totalorder %v225, %v1186
        %vm1249 = vcmp.eq.s32.totalorder %v226, %v1182
        %vm1250 = vcmp.eq.s32.totalorder %v226, %v1186
        %v1251 = vsel %vm1187, 1, 0
        %v1252 = vsel %vm1188, 1, 0
        %v1253 = vsel %vm1189, 1, 0
        %v1254 = vsel %vm1190, 1, 0
        %v1255 = vsel %vm1191, 1, 0
        %v1256 = vsel %vm1192, 1, 0
        %v1257 = vsel %vm1193, 1, 0
        %v1258 = vsel %vm1194, 1, 0
        %v1259 = vsel %vm1195, 1, 0
        %v1260 = vsel %vm1196, 1, 0
        %v1261 = vsel %vm1197, 1, 0
        %v1262 = vsel %vm1198, 1, 0
        %v1263 = vsel %vm1199, 1, 0
        %v1264 = vsel %vm1200, 1, 0
        %v1265 = vsel %vm1201, 1, 0
        %v1266 = vsel %vm1202, 1, 0
        %v1267 = vsel %vm1203, 1, 0
        %v1268 = vsel %vm1204, 1, 0
        %v1269 = vsel %vm1205, 1, 0
        %v1270 = vsel %vm1206, 1, 0
        %v1271 = vsel %vm1207, 1, 0
        %v1272 = vsel %vm1208, 1, 0
        %v1273 = vsel %vm1209, 1, 0
        %v1274 = vsel %vm1210, 1, 0
        %v1275 = vsel %vm1211, 1, 0
        %v1276 = vsel %vm1212, 1, 0
        %v1277 = vsel %vm1213, 1, 0
        %v1278 = vsel %vm1214, 1, 0
        %v1279 = vsel %vm1215, 1, 0
        %v1280 = vsel %vm1216, 1, 0
        %v1281 = vsel %vm1217, 1, 0
        %v1282 = vsel %vm1218, 1, 0
        %v1283 = vsel %vm1219, 1, 0
        %v1284 = vsel %vm1220, 1, 0
        %v1285 = vsel %vm1221, 1, 0
        %v1286 = vsel %vm1222, 1, 0
        %v1287 = vsel %vm1223, 1, 0
        %v1288 = vsel %vm1224, 1, 0
        %v1289 = vsel %vm1225, 1, 0
        %v1290 = vsel %vm1226, 1, 0
        %v1291 = vsel %vm1227, 1, 0
        %v1292 = vsel %vm1228, 1, 0
        %v1293 = vsel %vm1229, 1, 0
        %v1294 = vsel %vm1230, 1, 0
        %v1295 = vsel %vm1231, 1, 0
        %v1296 = vsel %vm1232, 1, 0
        %v1297 = vsel %vm1233, 1, 0
        %v1298 = vsel %vm1234, 1, 0
        %v1299 = vsel %vm1235, 1, 0
        %v1300 = vsel %vm1236, 1, 0
        %v1301 = vsel %vm1237, 1, 0
        %v1302 = vsel %vm1238, 1, 0
        %v1303 = vsel %vm1239, 1, 0
        %v1304 = vsel %vm1240, 1, 0
        %v1305 = vsel %vm1241, 1, 0
        %v1306 = vsel %vm1242, 1, 0
        %v1307 = vsel %vm1243, 1, 0
        %v1308 = vsel %vm1244, 1, 0
        %v1309 = vsel %vm1245, 1, 0
        %v1310 = vsel %vm1246, 1, 0
        %v1311 = vsel %vm1247, 1, 0
        %v1312 = vsel %vm1248, 1, 0
        %v1313 = vsel %vm1249, 1, 0
        %v1314 = vsel %vm1250, 1, 0
        %v1315 = vcvt.s32.f32 %v1251
        %v1316 = vcvt.s32.f32 %v1252
        %v1317 = vcvt.s32.f32 %v1253
        %v1318 = vcvt.s32.f32 %v1254
        %v1319 = vcvt.s32.f32 %v1255
        %v1320 = vcvt.s32.f32 %v1256
        %v1321 = vcvt.s32.f32 %v1257
        %v1322 = vcvt.s32.f32 %v1258
        %v1323 = vcvt.s32.f32 %v1259
        %v1324 = vcvt.s32.f32 %v1260
        %v1325 = vcvt.s32.f32 %v1261
        %v1326 = vcvt.s32.f32 %v1262
        %v1327 = vcvt.s32.f32 %v1263
        %v1328 = vcvt.s32.f32 %v1264
        %v1329 = vcvt.s32.f32 %v1265
        %v1330 = vcvt.s32.f32 %v1266
        %v1331 = vcvt.s32.f32 %v1267
        %v1332 = vcvt.s32.f32 %v1268
        %v1333 = vcvt.s32.f32 %v1269
        %v1334 = vcvt.s32.f32 %v1270
        %v1335 = vcvt.s32.f32 %v1271
        %v1336 = vcvt.s32.f32 %v1272
        %v1337 = vcvt.s32.f32 %v1273
        %v1338 = vcvt.s32.f32 %v1274
        %v1339 = vcvt.s32.f32 %v1275
        %v1340 = vcvt.s32.f32 %v1276
        %v1341 = vcvt.s32.f32 %v1277
        %v1342 = vcvt.s32.f32 %v1278
        %v1343 = vcvt.s32.f32 %v1279
        %v1344 = vcvt.s32.f32 %v1280
        %v1345 = vcvt.s32.f32 %v1281
        %v1346 = vcvt.s32.f32 %v1282
        %v1347 = vcvt.s32.f32 %v1283
        %v1348 = vcvt.s32.f32 %v1284
        %v1349 = vcvt.s32.f32 %v1285
        %v1350 = vcvt.s32.f32 %v1286
        %v1351 = vcvt.s32.f32 %v1287
        %v1352 = vcvt.s32.f32 %v1288
        %v1353 = vcvt.s32.f32 %v1289
        %v1354 = vcvt.s32.f32 %v1290
        %v1355 = vcvt.s32.f32 %v1291
        %v1356 = vcvt.s32.f32 %v1292
        %v1357 = vcvt.s32.f32 %v1293
        %v1358 = vcvt.s32.f32 %v1294
        %v1359 = vcvt.s32.f32 %v1295
        %v1360 = vcvt.s32.f32 %v1296
        %v1361 = vcvt.s32.f32 %v1297
        %v1362 = vcvt.s32.f32 %v1298
        %v1363 = vcvt.s32.f32 %v1299
        %v1364 = vcvt.s32.f32 %v1300
        %v1365 = vcvt.s32.f32 %v1301
        %v1366 = vcvt.s32.f32 %v1302
        %v1367 = vcvt.s32.f32 %v1303
        %v1368 = vcvt.s32.f32 %v1304
        %v1369 = vcvt.s32.f32 %v1305
        %v1370 = vcvt.s32.f32 %v1306
        %v1371 = vcvt.s32.f32 %v1307
        %v1372 = vcvt.s32.f32 %v1308
        %v1373 = vcvt.s32.f32 %v1309
        %v1374 = vcvt.s32.f32 %v1310
        %v1375 = vcvt.s32.f32 %v1311
        %v1376 = vcvt.s32.f32 %v1312
        %v1377 = vcvt.s32.f32 %v1313
        %v1378 = vcvt.s32.f32 %v1314
        %v1379 = vpack.c.bf16 %v1317, %v1315
        %v1380 = vpack.c.bf16 %v1318, %v1316
        %v1381 = vpack.c.bf16 %v1321, %v1319
        %v1382 = vpack.c.bf16 %v1322, %v1320
        %v1383 = vpack.c.bf16 %v1325, %v1323
        %v1384 = vpack.c.bf16 %v1326, %v1324
        %v1385 = vpack.c.bf16 %v1329, %v1327
        %v1386 = vpack.c.bf16 %v1330, %v1328
        %v1387 = vpack.c.bf16 %v1333, %v1331
        %v1388 = vpack.c.bf16 %v1334, %v1332
        %v1389 = vpack.c.bf16 %v1337, %v1335
        %v1390 = vpack.c.bf16 %v1338, %v1336
        %v1391 = vpack.c.bf16 %v1341, %v1339
        %v1392 = vpack.c.bf16 %v1342, %v1340
        %v1393 = vpack.c.bf16 %v1345, %v1343
        %v1394 = vpack.c.bf16 %v1346, %v1344
        %v1395 = vpack.c.bf16 %v1349, %v1347
        %v1396 = vpack.c.bf16 %v1350, %v1348
        %v1397 = vpack.c.bf16 %v1353, %v1351
        %v1398 = vpack.c.bf16 %v1354, %v1352
        %v1399 = vpack.c.bf16 %v1357, %v1355
        %v1400 = vpack.c.bf16 %v1358, %v1356
        %v1401 = vpack.c.bf16 %v1361, %v1359
        %v1402 = vpack.c.bf16 %v1362, %v1360
        %v1403 = vpack.c.bf16 %v1365, %v1363
        %v1404 = vpack.c.bf16 %v1366, %v1364
        %v1405 = vpack.c.bf16 %v1369, %v1367
        %v1406 = vpack.c.bf16 %v1370, %v1368
        %v1407 = vpack.c.bf16 %v1373, %v1371
        %v1408 = vpack.c.bf16 %v1374, %v1372
        %v1409 = vpack.c.bf16 %v1377, %v1375
        %v1410 = vpack.c.bf16 %v1378, %v1376
        %v1411 = vld [vmem:[#allocation5 + $0x10] sm:$0xff]
        %v1412 = vld [vmem:[#allocation5 + $0x28] sm:$0xff]
        %v1413 = vld [vmem:[#allocation5 + $0x40] sm:$0xff]
        %v1414 = vld [vmem:[#allocation5 + $0x58] sm:$0xff]
        %v1415 = vld [vmem:[#allocation5 + $0x70] sm:$0xff]
        %v1416 = vld [vmem:[#allocation5 + $0x88] sm:$0xff]
        %v1417 = vld [vmem:[#allocation5 + $0xa0] sm:$0xff]
        %v1418 = vld [vmem:[#allocation5 + $0xb8] sm:$0xff]
        %v1419 = vld [vmem:[#allocation5 + $0xd0] sm:$0xff]
        %v1420 = vld [vmem:[#allocation5 + $0xe8] sm:$0xff]
        %v1421 = vld [vmem:[#allocation5 + $0x100] sm:$0xff]
        %v1422 = vld [vmem:[#allocation5 + $0x118] sm:$0xff]
        %v1423 = vld [vmem:[#allocation5 + $0x130] sm:$0xff]
        %v1424 = vld [vmem:[#allocation5 + $0x148] sm:$0xff]
        %v1425 = vld [vmem:[#allocation5 + $0x160] sm:$0xff]
        %v1426 = vld [vmem:[#allocation5 + $0x178] sm:$0xff]
        %v1427 = vld [vmem:[#allocation5 + $0x190] sm:$0xff]
        %v1428 = vld [vmem:[#allocation5 + $0x1a8] sm:$0xff]
        %v1447 = vunpack.c.l.b16 %v1411
        %v1448 = vunpack.c.h.b16 %v1411
        %v1449 = vunpack.c.l.b16 %v1412
        %v1450 = vunpack.c.h.b16 %v1412
        %v1451 = vunpack.c.l.b16 %v1413
        %v1452 = vunpack.c.h.b16 %v1413
        %v1453 = vunpack.c.l.b16 %v1414
        %v1454 = vunpack.c.h.b16 %v1414
        %v1455 = vunpack.c.l.b16 %v1415
        %v1456 = vunpack.c.h.b16 %v1415
        %v1457 = vunpack.c.l.b16 %v1416
        %v1458 = vunpack.c.h.b16 %v1416
        %v1459 = vunpack.c.l.b16 %v1417
        %v1460 = vunpack.c.h.b16 %v1417
        %v1461 = vunpack.c.l.b16 %v1418
        %v1462 = vunpack.c.h.b16 %v1418
        %v1463 = vunpack.c.l.b16 %v1419
        %v1464 = vunpack.c.h.b16 %v1419
        %v1465 = vunpack.c.l.b16 %v1420
        %v1466 = vunpack.c.h.b16 %v1420
        %v1467 = vunpack.c.l.b16 %v1421
        %v1468 = vunpack.c.h.b16 %v1421
        %v1469 = vunpack.c.l.b16 %v1422
        %v1470 = vunpack.c.h.b16 %v1422
        %v1471 = vunpack.c.l.b16 %v1423
        %v1472 = vunpack.c.h.b16 %v1423
        %v1473 = vunpack.c.l.b16 %v1424
        %v1474 = vunpack.c.h.b16 %v1424
        %v1475 = vunpack.c.l.b16 %v1425
        %v1476 = vunpack.c.h.b16 %v1425
        %v1477 = vunpack.c.l.b16 %v1426
        %v1478 = vunpack.c.h.b16 %v1426
        %v1479 = vunpack.c.l.b16 %v1427
        %v1480 = vunpack.c.h.b16 %v1427
        %v1481 = vunpack.c.l.b16 %v1428
        %v1482 = vunpack.c.h.b16 %v1428
        %v1483 = vpack.c.b16 %v1449, %v1447
        %v1484 = vpack.c.b16 %v1450, %v1448
        %v1485 = vpack.c.b16 %v1453, %v1451
        %v1486 = vpack.c.b16 %v1454, %v1452
        %v1487 = vpack.c.b16 %v1457, %v1455
        %v1488 = vpack.c.b16 %v1458, %v1456
        %v1489 = vpack.c.b16 %v1461, %v1459
        %v1490 = vpack.c.b16 %v1462, %v1460
        %v1491 = vpack.c.b16 %v1465, %v1463
        %v1492 = vpack.c.b16 %v1466, %v1464
        %v1493 = vpack.c.b16 %v1469, %v1467
        %v1494 = vpack.c.b16 %v1470, %v1468
        %v1495 = vpack.c.b16 %v1473, %v1471
        %v1496 = vpack.c.b16 %v1474, %v1472
        %v1497 = vpack.c.b16 %v1477, %v1475
        %v1498 = vpack.c.b16 %v1478, %v1476
        %v1499 = vpack.c.b16 %v1481, %v1479
        %v1500 = vpack.c.b16 %v1482, %v1480
        %1519 = vmatprep.subr.bf16.mxu0 %v1394
        %1520 = vmatpush1.bf16.msra.mxu0 %v1393
        %1521 = vmatprep.subr.bf16.mxu0 %v1392
        %1522 = vmatpush1.bf16.msra.mxu0 %v1391
        %1523 = vmatprep.subr.bf16.mxu0 %v1390
        %1524 = vmatpush1.bf16.msra.mxu0 %v1389
        %1525 = vmatprep.subr.bf16.mxu0 %v1388
        %1526 = vmatpush1.bf16.msra.mxu0 %v1387
        %1527 = vmatprep.subr.bf16.mxu0 %v1386
        %1528 = vmatpush1.bf16.msra.mxu0 %v1385
        %1529 = vmatprep.subr.bf16.mxu0 %v1384
        %1530 = vmatpush1.bf16.msra.mxu0 %v1383
        %1531 = vmatprep.subr.bf16.mxu0 %v1382
        %1532 = vmatpush1.bf16.msra.mxu0 %v1381
        %1533 = vmatprep.subr.bf16.mxu0 %v1380
        %1534 = vmatpush1.bf16.msra.mxu0 %v1379
        %1535 = vmatprep.subr.bf16.mxu0 %v1410
        %1536 = vmatpush2.bf16.msra.mxu0 %v1409
        %1537 = vmatprep.subr.bf16.mxu0 %v1408
        %1538 = vmatpush2.bf16.msra.mxu0 %v1407
        %1539 = vmatprep.subr.bf16.mxu0 %v1406
        %1540 = vmatpush2.bf16.msra.mxu0 %v1405
        %1541 = vmatprep.subr.bf16.mxu0 %v1404
        %1542 = vmatpush2.bf16.msra.mxu0 %v1403
        %1543 = vmatprep.subr.bf16.mxu0 %v1402
        %1544 = vmatpush2.bf16.msra.mxu0 %v1401
        %1545 = vmatprep.subr.bf16.mxu0 %v1400
        %1546 = vmatpush2.bf16.msra.mxu0 %v1399
        %1547 = vmatprep.subr.bf16.mxu0 %v1398
        %1548 = vmatpush2.bf16.msra.mxu0 %v1397
        %1549 = vmatprep.subr.bf16.mxu0 %v1396
        %1550 = vmatpush2.bf16.msra.mxu0 %v1395
        %1551 = vmatprep.mubr.bf16.mxu0 %v1484
        %1552 = vmatmul.mubr.bf16.gmra.mxu0 %v1483
        %v1553 = vpop.f32.mrf.mxu0
        %v1554 = vadd.f32 0.0, %v1553
        %v1555 = vpop.f32.mrf.mxu0
        %v1556 = vadd.f32 0.0, %v1555
        %v1557 = vpop.f32.mrf.mxu0
        %v1558 = vadd.f32 0.0, %v1557
        %v1559 = vpop.f32.mrf.mxu0
        %v1560 = vadd.f32 0.0, %v1559
        %1561 = vmatprep.mubr.bf16.mxu0 %v1486
        %1562 = vmatmul.mubr.bf16.gmra.mxu0 %v1485
        %v1563 = vpop.f32.mrf.mxu0
        %v1564 = vadd.f32 0.0, %v1563
        %v1565 = vpop.f32.mrf.mxu0
        %v1566 = vadd.f32 0.0, %v1565
        %v1567 = vpop.f32.mrf.mxu0
        %v1568 = vadd.f32 0.0, %v1567
        %v1569 = vpop.f32.mrf.mxu0
        %v1570 = vadd.f32 0.0, %v1569
        %1571 = vmatprep.mubr.bf16.mxu0 %v1488
        %1572 = vmatmul.mubr.bf16.gmra.mxu0 %v1487
        %v1573 = vpop.f32.mrf.mxu0
        %v1574 = vadd.f32 0.0, %v1573
        %v1575 = vpop.f32.mrf.mxu0
        %v1576 = vadd.f32 0.0, %v1575
        %v1577 = vpop.f32.mrf.mxu0
        %v1578 = vadd.f32 0.0, %v1577
        %v1579 = vpop.f32.mrf.mxu0
        %v1580 = vadd.f32 0.0, %v1579
        %1581 = vmatprep.mubr.bf16.mxu0 %v1490
        %1582 = vmatmul.mubr.bf16.gmra.mxu0 %v1489
        %v1583 = vpop.f32.mrf.mxu0
        %v1584 = vadd.f32 0.0, %v1583
        %v1585 = vpop.f32.mrf.mxu0
        %v1586 = vadd.f32 0.0, %v1585
        %v1587 = vpop.f32.mrf.mxu0
        %v1588 = vadd.f32 0.0, %v1587
        %v1589 = vpop.f32.mrf.mxu0
        %v1590 = vadd.f32 0.0, %v1589
        %1591 = vmatprep.mubr.bf16.mxu0 %v1492
        %1592 = vmatmul.mubr.bf16.gmra.mxu0 %v1491
        %v1593 = vpop.f32.mrf.mxu0
        %v1594 = vadd.f32 0.0, %v1593
        %v1595 = vpop.f32.mrf.mxu0
        %v1596 = vadd.f32 0.0, %v1595
        %v1597 = vpop.f32.mrf.mxu0
        %v1598 = vadd.f32 0.0, %v1597
        %v1599 = vpop.f32.mrf.mxu0
        %v1600 = vadd.f32 0.0, %v1599
        %1601 = vmatprep.mubr.bf16.mxu0 %v1494
        %1602 = vmatmul.mubr.bf16.gmra.mxu0 %v1493
        %v1603 = vpop.f32.mrf.mxu0
        %v1604 = vadd.f32 0.0, %v1603
        %v1605 = vpop.f32.mrf.mxu0
        %v1606 = vadd.f32 0.0, %v1605
        %v1607 = vpop.f32.mrf.mxu0
        %v1608 = vadd.f32 0.0, %v1607
        %v1609 = vpop.f32.mrf.mxu0
        %v1610 = vadd.f32 0.0, %v1609
        %1611 = vmatprep.mubr.bf16.mxu0 %v1496
        %1612 = vmatmul.mubr.bf16.gmra.mxu0 %v1495
        %v1613 = vpop.f32.mrf.mxu0
        %v1614 = vadd.f32 0.0, %v1613
        %v1615 = vpop.f32.mrf.mxu0
        %v1616 = vadd.f32 0.0, %v1615
        %v1617 = vpop.f32.mrf.mxu0
        %v1618 = vadd.f32 0.0, %v1617
        %v1619 = vpop.f32.mrf.mxu0
        %v1620 = vadd.f32 0.0, %v1619
        %1621 = vmatprep.mubr.bf16.mxu0 %v1498
        %1622 = vmatmul.mubr.bf16.gmra.mxu0 %v1497
        %v1623 = vpop.f32.mrf.mxu0
        %v1624 = vadd.f32 0.0, %v1623
        %v1625 = vpop.f32.mrf.mxu0
        %v1626 = vadd.f32 0.0, %v1625
        %v1627 = vpop.f32.mrf.mxu0
        %v1628 = vadd.f32 0.0, %v1627
        %v1629 = vpop.f32.mrf.mxu0
        %v1630 = vadd.f32 0.0, %v1629
        %1631 = vmatprep.mubr.bf16.mxu0 %v1500
        %1632 = vmatmul.mubr.bf16.gmra.mxu0 %v1499
        %v1633 = vpop.f32.mrf.mxu0
        %v1634 = vadd.f32 0.0, %v1633
        %v1635 = vpop.f32.mrf.mxu0
        %v1636 = vadd.f32 0.0, %v1635
        %v1637 = vpop.f32.mrf.mxu0
        %v1638 = vadd.f32 0.0, %v1637
        %v1639 = vpop.f32.mrf.mxu0
        %v1640 = vadd.f32 0.0, %v1639
        %1641 = vdwg.mxu0
        %v1642 = vadd.f32 %v1082, %v1554
        %v1643 = vadd.f32 %v1084, %v1556
        %v1644 = vadd.f32 %v1086, %v1558
        %v1645 = vadd.f32 %v1088, %v1560
        %v1646 = vadd.f32 %v1092, %v1564
        %v1647 = vadd.f32 %v1094, %v1566
        %v1648 = vadd.f32 %v1096, %v1568
        %v1649 = vadd.f32 %v1098, %v1570
        %v1650 = vadd.f32 %v1102, %v1574
        %v1651 = vadd.f32 %v1104, %v1576
        %v1652 = vadd.f32 %v1106, %v1578
        %v1653 = vadd.f32 %v1108, %v1580
        %v1654 = vadd.f32 %v1112, %v1584
        %v1655 = vadd.f32 %v1114, %v1586
        %v1656 = vadd.f32 %v1116, %v1588
        %v1657 = vadd.f32 %v1118, %v1590
        %v1658 = vadd.f32 %v1122, %v1594
        %v1659 = vadd.f32 %v1124, %v1596
        %v1660 = vadd.f32 %v1126, %v1598
        %v1661 = vadd.f32 %v1128, %v1600
        %v1662 = vadd.f32 %v1132, %v1604
        %v1663 = vadd.f32 %v1134, %v1606
        %v1664 = vadd.f32 %v1136, %v1608
        %v1665 = vadd.f32 %v1138, %v1610
        %v1666 = vadd.f32 %v1142, %v1614
        %v1667 = vadd.f32 %v1144, %v1616
        %v1668 = vadd.f32 %v1146, %v1618
        %v1669 = vadd.f32 %v1148, %v1620
        %v1670 = vadd.f32 %v1152, %v1624
        %v1671 = vadd.f32 %v1154, %v1626
        %v1672 = vadd.f32 %v1156, %v1628
        %v1673 = vadd.f32 %v1158, %v1630
        %v1674 = vadd.f32 %v1162, %v1634
        %v1675 = vadd.f32 %v1164, %v1636
        %v1676 = vadd.f32 %v1166, %v1638
        %v1677 = vadd.f32 %v1168, %v1640
        %v1678 = vadd.f32 %v1642, %v1654
        %v1679 = vadd.f32 %v1643, %v1655
        %v1680 = vadd.f32 %v1644, %v1656
        %v1681 = vadd.f32 %v1645, %v1657
        %v1682 = vadd.f32 %v1646, %v1658
        %v1683 = vadd.f32 %v1647, %v1659
        %v1684 = vadd.f32 %v1648, %v1660
        %v1685 = vadd.f32 %v1649, %v1661
        %v1686 = vadd.f32 %v1650, %v1662
        %v1687 = vadd.f32 %v1651, %v1663
        %v1688 = vadd.f32 %v1652, %v1664
        %v1689 = vadd.f32 %v1653, %v1665
        %v1690 = vadd.f32 %v1678, %v1666
        %v1691 = vadd.f32 %v1679, %v1667
        %v1692 = vadd.f32 %v1680, %v1668
        %v1693 = vadd.f32 %v1681, %v1669
        %v1694 = vadd.f32 %v1682, %v1670
        %v1695 = vadd.f32 %v1683, %v1671
        %v1696 = vadd.f32 %v1684, %v1672
        %v1697 = vadd.f32 %v1685, %v1673
        %v1698 = vadd.f32 %v1686, %v1674
        %v1699 = vadd.f32 %v1687, %v1675
        %v1700 = vadd.f32 %v1688, %v1676
        %v1701 = vadd.f32 %v1689, %v1677
        %v1702 = vsub.f32 1.0, %v180
        %v1704 = vlaneseq
        %v1705 = vshrl.u32 %v1704, 7
        %v1706 = vsub.s32 1, %v1705
        %v1707 = vrot.slane %v1702, %v1706
        %v1708 = vlaneseq
        %v1709 = vshrl.u32 %v1708, 7
        %v1710 = vsub.s32 5, %v1709
        %v1711 = vrot.slane %v1702, %v1710
        %v1714 = vlaneseq
        %v1715 = vshrl.u32 %v1714, 7
        %v1716 = vsub.s32 1, %v1715
        %v1717 = vrot.slane %v1707, %v1716
        %v1718 = vlaneseq
        %v1719 = vshrl.u32 %v1718, 7
        %v1720 = vsub.s32 1, %v1719
        %v1721 = vrot.slane %v1711, %v1720
        %v1722 = vmul.f32 %v1717, %v1690
        %v1723 = vmul.f32 %v1721, %v1691
        %v1725 = vlaneseq
        %v1726 = vshrl.u32 %v1725, 7
        %v1727 = vsub.s32 1, %v1726
        %v1728 = vrot.slane %v180, %v1727
        %v1729 = vlaneseq
        %v1730 = vshrl.u32 %v1729, 7
        %v1731 = vsub.s32 5, %v1730
        %v1732 = vrot.slane %v180, %v1731
        %v1735 = vlaneseq
        %v1736 = vshrl.u32 %v1735, 7
        %v1737 = vsub.s32 1, %v1736
        %v1738 = vrot.slane %v1728, %v1737
        %v1739 = vlaneseq
        %v1740 = vshrl.u32 %v1739, 7
        %v1741 = vsub.s32 1, %v1740
        %v1742 = vrot.slane %v1732, %v1741
        %v1743 = vmul.f32 %v1738, %v1690
        %v1744 = vmul.f32 %v1742, %v1691
        %v1745 = vmul.f32 %v1738, %v1692
        %v1746 = vmul.f32 %v1742, %v1693
        %vm1751 = vcmask 1041408
        %v1752 = vrot.slane %v1743, 6
        %v1753 = vrot.slane %v1745, 6
        %v1754 = vsel %vm1751, %v1752, %v1753
        %v1755 = vrot.slane %v1744, 6
        %v1756 = vrot.slane %v1746, 6
        %v1757 = vsel %vm1751, %v1755, %v1756
        %v1760 = vadd.f32 %v1722, %v1754
        %v1761 = vadd.f32 %v1723, %v1757
        %v1762 = vmul.f32 %v1717, %v1692
        %v1763 = vmul.f32 %v1721, %v1693
        %v1764 = vmul.f32 %v1717, %v1694
        %v1765 = vmul.f32 %v1721, %v1695
        %v1766 = vmul.f32 %v1738, %v1694
        %v1767 = vmul.f32 %v1742, %v1695
        %v1770 = vrot.slane %v1766, 6
        %v1771 = vrot.slane %v1767, 6
        %v1774 = vadd.f32 %v1762, %v1770
        %v1775 = vadd.f32 %v1763, %v1771
        %v1776 = vadd.f32 %v1764, %v1770
        %v1777 = vadd.f32 %v1765, %v1771
        %v1778 = vmul.f32 %v1717, %v1696
        %v1779 = vmul.f32 %v1721, %v1697
        %v1780 = vmul.f32 %v1738, %v1696
        %v1781 = vmul.f32 %v1742, %v1697
        %v1782 = vmul.f32 %v1738, %v1698
        %v1783 = vmul.f32 %v1742, %v1699
        %v1788 = vrot.slane %v1780, 6
        %v1789 = vrot.slane %v1782, 6
        %v1790 = vsel %vm1751, %v1788, %v1789
        %v1791 = vrot.slane %v1781, 6
        %v1792 = vrot.slane %v1783, 6
        %v1793 = vsel %vm1751, %v1791, %v1792
        %v1796 = vadd.f32 %v1778, %v1790
        %v1797 = vadd.f32 %v1779, %v1793
        %v1798 = vmul.f32 %v1717, %v1698
        %v1799 = vmul.f32 %v1721, %v1699
        %v1800 = vmul.f32 %v1717, %v1700
        %v1801 = vmul.f32 %v1721, %v1701
        %v1802 = vmul.f32 %v1738, %v1700
        %v1803 = vmul.f32 %v1742, %v1701
        %v1806 = vrot.slane %v1802, 6
        %v1807 = vrot.slane %v1803, 6
        %v1810 = vadd.f32 %v1798, %v1806
        %v1811 = vadd.f32 %v1799, %v1807
        %v1812 = vadd.f32 %v1800, %v1806
        %v1813 = vadd.f32 %v1801, %v1807
        %v1814 = vlaneseq
        %v1815 = vshrl.u32 %v1814, 7
        %v1816 = vsub.s32 2, %v1815
        %v1817 = vrot.slane %v1702, %v1816
        %v1818 = vlaneseq
        %v1819 = vshrl.u32 %v1818, 7
        %v1820 = vsub.s32 6, %v1819
        %v1821 = vrot.slane %v1702, %v1820
        %v1824 = vlaneseq
        %v1825 = vshrl.u32 %v1824, 7
        %v1826 = vsub.s32 2, %v1825
        %v1827 = vrot.slane %v1817, %v1826
        %v1828 = vlaneseq
        %v1829 = vshrl.u32 %v1828, 7
        %v1830 = vsub.s32 2, %v1829
        %v1831 = vrot.slane %v1821, %v1830
        %v1832 = vmul.f32 %v1827, %v1760
        %v1833 = vmul.f32 %v1831, %v1761
        %v1834 = vlaneseq
        %v1835 = vshrl.u32 %v1834, 7
        %v1836 = vsub.s32 2, %v1835
        %v1837 = vrot.slane %v180, %v1836
        %v1838 = vlaneseq
        %v1839 = vshrl.u32 %v1838, 7
        %v1840 = vsub.s32 6, %v1839
        %v1841 = vrot.slane %v180, %v1840
        %v1844 = vlaneseq
        %v1845 = vshrl.u32 %v1844, 7
        %v1846 = vsub.s32 2, %v1845
        %v1847 = vrot.slane %v1837, %v1846
        %v1848 = vlaneseq
        %v1849 = vshrl.u32 %v1848, 7
        %v1850 = vsub.s32 2, %v1849
        %v1851 = vrot.slane %v1841, %v1850
        %v1852 = vmul.f32 %v1847, %v1774
        %v1853 = vmul.f32 %v1851, %v1775
        %v1854 = vmul.f32 %v1847, %v1776
        %v1855 = vmul.f32 %v1851, %v1777
        %vm1860 = vcmask 1043456
        %v1861 = vrot.slane %v1852, 4
        %v1862 = vrot.slane %v1854, 4
        %v1863 = vsel %vm1860, %v1861, %v1862
        %v1864 = vrot.slane %v1853, 4
        %v1865 = vrot.slane %v1855, 4
        %v1866 = vsel %vm1860, %v1864, %v1865
        %v1869 = vadd.f32 %v1832, %v1863
        %v1870 = vadd.f32 %v1833, %v1866
        %v1871 = vmul.f32 %v1827, %v1796
        %v1872 = vmul.f32 %v1831, %v1797
        %v1873 = vmul.f32 %v1847, %v1810
        %v1874 = vmul.f32 %v1851, %v1811
        %v1875 = vmul.f32 %v1847, %v1812
        %v1876 = vmul.f32 %v1851, %v1813
        %v1881 = vrot.slane %v1873, 4
        %v1882 = vrot.slane %v1875, 4
        %v1883 = vsel %vm1860, %v1881, %v1882
        %v1884 = vrot.slane %v1874, 4
        %v1885 = vrot.slane %v1876, 4
        %v1886 = vsel %vm1860, %v1884, %v1885
        %v1889 = vadd.f32 %v1871, %v1883
        %v1890 = vadd.f32 %v1872, %v1886
        %v1891 = vlaneseq
        %v1892 = vshrl.u32 %v1891, 7
        %v1893 = vsub.s32 3, %v1892
        %v1894 = vrot.slane %v1702, %v1893
        %v1895 = vlaneseq
        %v1896 = vshrl.u32 %v1895, 7
        %v1897 = vsub.s32 7, %v1896
        %v1898 = vrot.slane %v1702, %v1897
        %v1901 = vlaneseq
        %v1902 = vshrl.u32 %v1901, 7
        %v1903 = vsub.s32 3, %v1902
        %v1904 = vrot.slane %v1894, %v1903
        %v1905 = vlaneseq
        %v1906 = vshrl.u32 %v1905, 7
        %v1907 = vsub.s32 3, %v1906
        %v1908 = vrot.slane %v1898, %v1907
        %v1909 = vmul.f32 %v1904, %v1869
        %v1910 = vmul.f32 %v1908, %v1870
        %v1911 = vlaneseq
        %v1912 = vshrl.u32 %v1911, 7
        %v1913 = vsub.s32 3, %v1912
        %v1914 = vrot.slane %v180, %v1913
        %v1915 = vlaneseq
        %v1916 = vshrl.u32 %v1915, 7
        %v1917 = vsub.s32 7, %v1916
        %v1918 = vrot.slane %v180, %v1917
        %v1921 = vlaneseq
        %v1922 = vshrl.u32 %v1921, 7
        %v1923 = vsub.s32 3, %v1922
        %v1924 = vrot.slane %v1914, %v1923
        %v1925 = vlaneseq
        %v1926 = vshrl.u32 %v1925, 7
        %v1927 = vsub.s32 3, %v1926
        %v1928 = vrot.slane %v1918, %v1927
        %v1929 = vmul.f32 %v1924, %v1889
        %v1930 = vmul.f32 %v1928, %v1890
        %v1931 = vadd.f32 %v1909, %v1929
        %v1932 = vadd.f32 %v1910, %v1930
        %v1933 = vsub.f32 1.0, %v177
        %v1935 = vlaneseq
        %v1936 = vshrl.u32 %v1935, 7
        %v1937 = vsub.s32 0, %v1936
        %v1938 = vrot.slane %v1933, %v1937
        %v1939 = vlaneseq
        %v1940 = vshrl.u32 %v1939, 7
        %v1941 = vsub.s32 4, %v1940
        %v1942 = vrot.slane %v1933, %v1941
        %v1945 = vlaneseq
        %v1946 = vshrl.u32 %v1945, 7
        %v1947 = vsub.s32 0, %v1946
        %v1948 = vrot.slane %v1938, %v1947
        %v1949 = vlaneseq
        %v1950 = vshrl.u32 %v1949, 7
        %v1951 = vsub.s32 0, %v1950
        %v1952 = vrot.slane %v1942, %v1951
        %v1953 = vmul.f32 %v1948, %v1931
        %v1954 = vmul.f32 %v1952, %v1932
        %v1956 = vlaneseq
        %v1957 = vshrl.u32 %v1956, 7
        %v1958 = vsub.s32 0, %v1957
        %v1959 = vrot.slane %v177, %v1958
        %v1960 = vlaneseq
        %v1961 = vshrl.u32 %v1960, 7
        %v1962 = vsub.s32 4, %v1961
        %v1963 = vrot.slane %v177, %v1962
        %v1966 = vlaneseq
        %v1967 = vshrl.u32 %v1966, 7
        %v1968 = vsub.s32 0, %v1967
        %v1969 = vrot.slane %v1959, %v1968
        %v1970 = vlaneseq
        %v1971 = vshrl.u32 %v1970, 7
        %v1972 = vsub.s32 0, %v1971
        %v1973 = vrot.slane %v1963, %v1972
        %v1974 = vmul.f32 %v1969, %v1931
        %v1975 = vmul.f32 %v1973, %v1932
        %v1978 = vrot.slane %v1974, 3
        %v1979 = vrot.slane %v1975, 3
        %v1982 = vadd.f32 %v1953, %v1978
        %v1983 = vadd.f32 %v1954, %v1979
        %v1986 = vcombine.low %v1982, %v1983
        %1988 = vst [vmem:[%s174] sm:$0x77] %v1986
        %s1989 = sand.u32 %s75, 1
        %s1990 = scalar_lea.sflag [#allocation4], %s1989
        %s1991 = sand.u32 %s75, 1
        %s1992 = smul.addr %s1991, 8
        %s1993 = scalar_lea.vmem [#allocation7], %s1992
        // Predicated region
        $region37: #{tpu_custom_call.1} parent=27 // pred_check
          %p1994 = pneg %p85
        $region38: #{tpu_custom_call.1} parent=27 // pred_check_branch
          %1996 = sbr.rel (%p1994) target = $region40
        $region39: #{tpu_custom_call.1} parent=27 // pred_region
          %s1997 = smul.u32 2, %s20
          %s1999 = ssub.s32 128, 128
          %2000 = vsyncadd %s1990, %s1999
          %s2001 = smul.addr %s1997, 64
          %s2002 = scalar_lea.hbm %s2, %s2001
          %s2004 = sshll.u32 %s1993, 4
          %s2005 = int_to_ptr.vmem [resolvable:$true] %s2004
          %2007 = dma.vmem_to_hbm [thread:$0]  %s2005, 128, %s2002, %s1990
        $region40: #{tpu_custom_call.1} parent=27 // pred_fallthru
          _
      $region28: #{tpu_custom_call.1} parent=5 // pred_fallthru
        _
      %p2008 = scmp.le.s32.totalorder 2, %s15
      // Predicated region
      $region41: #{tpu_custom_call.1} parent=5 // pred_check
        %p2009 = pneg %p2008
      $region42: #{tpu_custom_call.1} parent=5 // pred_check_branch
        %2011 = sbr.rel (%p2009) target = $region44
      $region43: #{tpu_custom_call.1} parent=5 // pred_region
        %s2012 = ssub.s32 %s15, 2
        // Predicated region
        $region45: #{tpu_custom_call.1} parent=43 // pred_check
          %p2013 = pneg %p91
        $region46: #{tpu_custom_call.1} parent=43 // pred_check_branch
          %2015 = sbr.rel (%p2013) target = $region48
        $region47: #{tpu_custom_call.1} parent=43 // pred_region
          %s2016 = sand.u32 %s76, 1
          %s2017 = scalar_lea.sflag [#allocation4], %s2016
          %s2018 = sand.u32 %s76, 1
          %s2019 = smul.addr %s2018, 8
          %s2020 = scalar_lea.vmem [#allocation7], %s2019
          %2021 = dma.done %s2017, 128
        $region48: #{tpu_custom_call.1} parent=43 // pred_fallthru
          _
      $region44: #{tpu_custom_call.1} parent=5 // pred_fallthru
        _
    $region6: #{tpu_custom_call.1} parent=1 // loop_footer
      %s19 = sadd.s32 1, %s15
    $region7: #{tpu_custom_call.1} parent=1 // loop_footer_branch
      %14 = sbr.rel target = $region3
    $region8: #{tpu_custom_call.1} parent=1 // loop_exit
      _
    %2022 = vsyncpa [#allocation3], 1
    %s2023 = scalar_lea.sflag [#allocation3], 1
    %2024 = vsyncpa %s2023, 1
    %2025 = vsyncpa [#allocation6], 1
    %2026 = vsyncpa [#allocation4], 1
    %s2027 = scalar_lea.sflag [#allocation4], 1
    %2028 = vsyncpa %s2027, 1

</llo_original>
